<compile_context>
chip_gen: v7x
topology: tpu7x:2x2x1
jax: 0.10.0
libtpu: 0.0.40
codegen_flags: <defaults>
</compile_context>

<pallas_src>
import functools
import math

import jax
import jax.numpy as jnp
from jax import lax
from jax.experimental import pallas as pl
from jax.experimental.pallas import tpu as pltpu


def _round_up(x, m):
    return ((x + m - 1) // m) * m


def _projection_head_kernel(x_ref, w1_ref, b1_ref, w2_ref, b2_ref,
                            gamma_ref, beta_ref, o_ref, proj_acc,
                            *, approximate_gelu):
    """One (TILE_B, TILE_K) step of the fused ProjectionHead.

    Grid = (batch tiles, K tiles of the first matmul).  The first matmul is
    accumulated into `proj_acc` across the K axis; GELU, the second matmul,
    the residual and LayerNorm run once on the last K step.
    """
    k = pl.program_id(1)

    @pl.when(k == 0)
    def _init():
        proj_acc[...] = jnp.zeros_like(proj_acc)

    # projection = Linear(embedding_dim -> projection_dim): bf16 in, f32 acc.
    xb = x_ref[...].astype(jnp.bfloat16)
    proj_acc[...] += jnp.dot(xb, w1_ref[...], preferred_element_type=jnp.float32)

    @pl.when(k == pl.num_programs(1) - 1)
    def _finalize():
        projected = proj_acc[...] + b1_ref[...]

        if approximate_gelu:
            # tanh approximation: fewer VALU ops, uses the otherwise-idle EUP.
            c = math.sqrt(2.0 / math.pi)
            h = 0.5 * projected * (
                1.0 + jnp.tanh(c * (projected
                                    + 0.044715 * projected * projected * projected)))
        else:
            # Exact erf GELU — matches torch.nn.GELU() default semantics.
            h = 0.5 * projected * (1.0 + lax.erf(projected * (1.0 / math.sqrt(2.0))))

        # fc = Linear(projection_dim -> projection_dim)
        y = jnp.dot(h.astype(jnp.bfloat16), w2_ref[...],
                    preferred_element_type=jnp.float32) + b2_ref[...]

        # Dropout(p=0.1) is the identity in eval mode.
        # TODO(synk): training-mode dropout (stateful PRNG mask) not implemented.

        # residual connection + LayerNorm (eps=1e-5, affine), f32 math.
        y = y + projected
        mean = jnp.mean(y, axis=-1, keepdims=True)
        centered = y - mean
        var = jnp.mean(centered * centered, axis=-1, keepdims=True)
        normed = centered * lax.rsqrt(var + 1e-5)
        o_ref[...] = (normed * gamma_ref[...] + beta_ref[...]).astype(o_ref.dtype)


def projection_head(x, w1, b1, w2, b2, gamma, beta, *,
                    max_tile_b=1024, approximate_gelu=False, out_dtype=None):
    """Fused ProjectionHead forward.

    x: (B, E) f32 or bf16; w1: (E, P); w2: (P, P); b1/b2/gamma/beta: (1, P).
    Weights are stored (in, out) == transpose of PyTorch's (out, in).
    E and P must be multiples of 128.  B is padded internally to the batch tile.
    """
    B, E = x.shape
    P = w1.shape[1]
    assert E % 128 == 0 and P % 128 == 0, "E and P must be multiples of 128"

    out_dtype = x.dtype if out_dtype is None else out_dtype
    out_itemsize = jnp.dtype(out_dtype).itemsize
    x_itemsize = jnp.dtype(x.dtype).itemsize

    # ---- VMEM budget, generation aware (64 MiB/TC on v7x, 128 MiB on v5e/v6e) ----
    try:
        vmem_cap = int(pltpu.get_tpu_info().vmem_capacity_bytes)
    except Exception:
        vmem_cap = 64 * 1024 * 1024          # conservative fallback (v7x-sized)
    vmem_budget = int(0.85 * vmem_cap)

    # ---- Contraction (E) tiling of w1 so resident weights always fit VMEM ----
    # Assume the constant-index-map operands get double buffers (worst case).
    m = E // 128
    tk_candidates = sorted({128 * d for d in range(1, m + 1) if m % d == 0},
                           reverse=True)
    weight_budget = vmem_budget // 2
    tk, fixed_bytes = None, 0
    for cand in tk_candidates:
        fixed_bytes = 2 * (cand * P + P * P) * 2 + 8 * P * 4   # bf16 w1 tile + w2 + vectors
        if fixed_bytes <= weight_budget:
            tk = cand
            break
    if tk is None:
        # TODO(synk): tile the output (N) axis of w2 for very large projection_dim.
        raise ValueError("projection_dim too large for a VMEM-resident fc weight")

    # ---- Batch tile: largest that fits the remaining VMEM, >= ~4 pipeline steps ----
    per_row = (2 * E * x_itemsize            # streamed x tile (double-buffered)
               + 2 * P * out_itemsize        # output tile (double-buffered)
               + 4 * P * 4                   # proj accumulator + f32 intermediates
               + 2 * E + 2 * P)              # bf16 casts of x and h
    tb_max = max(16, (vmem_budget - fixed_bytes) // per_row)

    tb = min(max_tile_b, tb_max)
    if B > 128:
        # keep >= ~4 grid steps so the x DMA / compute / writeback overlap
        tb = min(tb, _round_up(pl.cdiv(B, 4), 128))
    tb = min(tb, _round_up(B, 16))
    if tb >= 128:
        tb = (tb // 128) * 128               # align with MXU M passes
    else:
        tb = max(16, (tb // 16) * 16)        # bf16 sublane (16-row) packing

    b_pad = pl.cdiv(B, tb) * tb
    if b_pad != B:
        x = jnp.pad(x, ((0, b_pad - B), (0, 0)))

    # bf16 weights: MXU-native, halves resident-weight footprint and DMA bytes.
    w1_bf = w1.astype(jnp.bfloat16)
    w2_bf = w2.astype(jnp.bfloat16)

    grid = (b_pad // tb, E // tk)

    used = (2 * tb * tk * x_itemsize + 2 * tb * P * out_itemsize
            + 4 * tb * P * 4 + tb * (tk + P) * 2 + fixed_bytes)
    vmem_limit = min(max(int(1.5 * used), 32 * 1024 * 1024),
                     int(0.9 * vmem_cap))

    cost = pl.CostEstimate(
        flops=2 * b_pad * E * P + 2 * b_pad * P * P,
        transcendentals=b_pad * P,                              # erf/tanh in GELU
        bytes_accessed=(b_pad * E * x_itemsize + b_pad * P * out_itemsize
                        + (E * P + P * P) * 2 + 4 * P * 4),
    )

    kernel = functools.partial(_projection_head_kernel,
                               approximate_gelu=approximate_gelu)

    out = pl.pallas_call(
        kernel,
        out_shape=jax.ShapeDtypeStruct((b_pad, P), out_dtype),
        grid=grid,
        in_specs=[
            pl.BlockSpec((tb, tk), lambda i, k: (i, k)),   # x: streamed per tile
            pl.BlockSpec((tk, P), lambda i, k: (k, 0)),    # w1: resident per k-slice
            pl.BlockSpec((1, P), lambda i, k: (0, 0)),     # b1: resident
            pl.BlockSpec((P, P), lambda i, k: (0, 0)),     # w2: resident
            pl.BlockSpec((1, P), lambda i, k: (0, 0)),     # b2: resident
            pl.BlockSpec((1, P), lambda i, k: (0, 0)),     # gamma: resident
            pl.BlockSpec((1, P), lambda i, k: (0, 0)),     # beta: resident
        ],
        out_specs=pl.BlockSpec((tb, P), lambda i, k: (i, 0)),
        scratch_shapes=[pltpu.VMEM((tb, P), jnp.float32)],
        compiler_params=pltpu.CompilerParams(
            # TODO(synk): evaluate pltpu.CORE_PARALLEL on the batch axis for v7x
            # (2 TCs/chip); "parallel" is the portable, known-good setting.
            dimension_semantics=("parallel", "arbitrary"),
            vmem_limit_bytes=vmem_limit,
        ),
        cost_estimate=cost,
    )(x, w1_bf, b1, w2_bf, b2, gamma, beta)

    return out[:B] if b_pad != B else out


def init_params(key, embedding_dim, projection_dim):
    """Deterministic init mimicking nn.Linear / nn.LayerNorm shapes."""
    k1, k2, k3, k4 = jax.random.split(key, 4)
    lim1 = 1.0 / math.sqrt(embedding_dim)
    lim2 = 1.0 / math.sqrt(projection_dim)
    # stored as (in, out) == transpose of PyTorch's (out, in)
    w1 = jax.random.uniform(k1, (embedding_dim, projection_dim),
                            jnp.float32, -lim1, lim1)
    b1 = jax.random.uniform(k2, (1, projection_dim), jnp.float32, -lim1, lim1)
    w2 = jax.random.uniform(k3, (projection_dim, projection_dim),
                            jnp.float32, -lim2, lim2)
    b2 = jax.random.uniform(k4, (1, projection_dim), jnp.float32, -lim2, lim2)
    gamma = jnp.ones((1, projection_dim), jnp.float32)
    beta = jnp.zeros((1, projection_dim), jnp.float32)
    return w1, b1, w2, b2, gamma, beta


if __name__ == "__main__":
    key = jax.random.PRNGKey(0)
    kx, kp = jax.random.split(key)

    # Small, lane-dense demo shapes; P=256 also matches the 256-wide MXU on
    # v6e/v7x, and B=500 exercises the batch-padding + multi-step grid path.
    batch, embedding_dim, projection_dim = 500, 256, 256
    x = jax.random.normal(kx, (batch, embedding_dim), jnp.float32)
    w1, b1, w2, b2, gamma, beta = init_params(kp, embedding_dim, projection_dim)

    out = projection_head(x, w1, b1, w2, b2, gamma, beta)
    jax.block_until_ready(out)

    # Pure-JAX reference using the same bf16-matmul / f32-accumulate recipe.
    xb = x.astype(jnp.bfloat16)
    projected = jnp.dot(xb, w1.astype(jnp.bfloat16),
                        preferred_element_type=jnp.float32) + b1
    h = 0.5 * projected * (1.0 + lax.erf(projected / math.sqrt(2.0)))
    y = jnp.dot(h.astype(jnp.bfloat16), w2.astype(jnp.bfloat16),
                preferred_element_type=jnp.float32) + b2 + projected
    mean = y.mean(-1, keepdims=True)
    var = ((y - mean) ** 2).mean(-1, keepdims=True)
    ref = (y - mean) / jnp.sqrt(var + 1e-5) * gamma + beta

    assert out.shape == (batch, projection_dim)
    assert jnp.allclose(out, ref, atol=5e-3, rtol=5e-3)

    print("KERNEL_OK")
</pallas_src>

<mosaic_0001>
module attributes {stable_mosaic.version = 11 : i64} {
  func.func @_projection_head_kernel(%arg0: i32, %arg1: i32, %arg2: memref<128x256xf32, #tpu.memory_space<vmem>>, %arg3: memref<256x256xbf16, #tpu.memory_space<vmem>>, %arg4: memref<1x256xf32, #tpu.memory_space<vmem>>, %arg5: memref<256x256xbf16, #tpu.memory_space<vmem>>, %arg6: memref<1x256xf32, #tpu.memory_space<vmem>>, %arg7: memref<1x256xf32, #tpu.memory_space<vmem>>, %arg8: memref<1x256xf32, #tpu.memory_space<vmem>>, %arg9: memref<128x256xf32, #tpu.memory_space<vmem>>, %arg10: memref<128x256xf32, #tpu.memory_space<vmem>>) attributes {dimension_semantics = [#tpu.dimension_semantics<parallel>, #tpu.dimension_semantics<arbitrary>], iteration_bounds = array<i64: 4, 1>, scalar_prefetch = 0 : i64, scratch_operands = 1 : i64, tpu.core_type = #tpu.core_type<tc>, window_params = [{transform_indices = @transform_0, window_bounds = array<i64: 128, 256>}, {transform_indices = @transform_1, window_bounds = array<i64: 256, 256>}, {pipeline_mode = #tpu.pipeline_mode<synchronous>, transform_indices = @transform_2, window_bounds = array<i64: 1, 256>}, {pipeline_mode = #tpu.pipeline_mode<synchronous>, transform_indices = @transform_3, window_bounds = array<i64: 256, 256>}, {pipeline_mode = #tpu.pipeline_mode<synchronous>, transform_indices = @transform_4, window_bounds = array<i64: 1, 256>}, {pipeline_mode = #tpu.pipeline_mode<synchronous>, transform_indices = @transform_5, window_bounds = array<i64: 1, 256>}, {pipeline_mode = #tpu.pipeline_mode<synchronous>, transform_indices = @transform_6, window_bounds = array<i64: 1, 256>}, {transform_indices = @transform_7, window_bounds = array<i64: 128, 256>}]} {
    %c0_i32 = arith.constant 0 : i32
    %0 = arith.cmpi eq, %arg1, %c0_i32 : i32
    %1 = arith.extui %0 : i1 to i32
    %c0_i32_0 = arith.constant 0 : i32
    %2 = arith.cmpi ne, %1, %c0_i32_0 : i32
    scf.if %2 {
      %cst_10 = arith.constant 0.000000e+00 : f32
      %13 = vector.broadcast %cst_10 : f32 to vector<128x256xf32>
      %c0_11 = arith.constant 0 : index
      %c0_12 = arith.constant 0 : index
      %14 = vector.load %arg10[%c0_11, %c0_12] : memref<128x256xf32, #tpu.memory_space<vmem>>, vector<128x256xf32>
      tpu.vector_store %arg10[%c0_11, %c0_12], %13 {strides = array<i32>} : memref<128x256xf32, #tpu.memory_space<vmem>>, vector<128x256xf32>,
    } else {
    }
    %c0 = arith.constant 0 : index
    %c0_1 = arith.constant 0 : index
    %3 = vector.load %arg2[%c0, %c0_1] : memref<128x256xf32, #tpu.memory_space<vmem>>, vector<128x256xf32>
    %4 = arith.truncf %3 : vector<128x256xf32> to vector<128x256xbf16>
    %c0_2 = arith.constant 0 : index
    %c0_3 = arith.constant 0 : index
    %5 = vector.load %arg10[%c0_2, %c0_3] : memref<128x256xf32, #tpu.memory_space<vmem>>, vector<128x256xf32>
    %c0_4 = arith.constant 0 : index
    %c0_5 = arith.constant 0 : index
    %6 = vector.load %arg3[%c0_4, %c0_5] : memref<256x256xbf16, #tpu.memory_space<vmem>>, vector<256x256xbf16>
    %cst = arith.constant dense<0.000000e+00> : vector<128x256xf32>
    %7 = tpu.matmul %4, %6, %cst {dimension_numbers = #tpu.dot_dimension_numbers<[1], [0], [0], [1], [0, 0, 1, 1], [], []>} : vector<128x256xbf16>, vector<256x256xbf16>, vector<128x256xf32> -> vector<128x256xf32>
    %8 = arith.addf %5, %7 : vector<128x256xf32>
    %c0_6 = arith.constant 0 : index
    %c0_7 = arith.constant 0 : index
    %9 = vector.load %arg10[%c0_6, %c0_7] : memref<128x256xf32, #tpu.memory_space<vmem>>, vector<128x256xf32>
    tpu.vector_store %arg10[%c0_6, %c0_7], %8 {strides = array<i32>} : memref<128x256xf32, #tpu.memory_space<vmem>>, vector<128x256xf32>,
    %c0_i32_8 = arith.constant 0 : i32
    %10 = arith.cmpi eq, %arg1, %c0_i32_8 : i32
    %11 = arith.extui %10 : i1 to i32
    %c0_i32_9 = arith.constant 0 : i32
    %12 = arith.cmpi ne, %11, %c0_i32_9 : i32
    scf.if %12 {
      %c0_10 = arith.constant 0 : index
      %c0_11 = arith.constant 0 : index
      %13 = vector.load %arg10[%c0_10, %c0_11] : memref<128x256xf32, #tpu.memory_space<vmem>>, vector<128x256xf32>
      %c0_12 = arith.constant 0 : index
      %c0_13 = arith.constant 0 : index
      %14 = vector.load %arg4[%c0_12, %c0_13] : memref<1x256xf32, #tpu.memory_space<vmem>>, vector<1x256xf32>
      %15 = vector.broadcast %14 : vector<1x256xf32> to vector<128x256xf32>
      %16 = arith.addf %13, %15 : vector<128x256xf32>
      %cst_14 = arith.constant 5.000000e-01 : f32
      %17 = vector.broadcast %cst_14 : f32 to vector<128x256xf32>
      %18 = arith.mulf %17, %16 : vector<128x256xf32>
      %cst_15 = arith.constant 0.707106769 : f32
      %19 = vector.broadcast %cst_15 : f32 to vector<128x256xf32>
      %20 = arith.mulf %16, %19 : vector<128x256xf32>
      %21 = math.erf %20 : vector<128x256xf32>
      %cst_16 = arith.constant 1.000000e+00 : f32
      %22 = vector.broadcast %cst_16 : f32 to vector<128x256xf32>
      %23 = arith.addf %22, %21 : vector<128x256xf32>
      %24 = arith.mulf %18, %23 : vector<128x256xf32>
      %25 = arith.truncf %24 : vector<128x256xf32> to vector<128x256xbf16>
      %c0_17 = arith.constant 0 : index
      %c0_18 = arith.constant 0 : index
      %26 = vector.load %arg5[%c0_17, %c0_18] : memref<256x256xbf16, #tpu.memory_space<vmem>>, vector<256x256xbf16>
      %cst_19 = arith.constant dense<0.000000e+00> : vector<128x256xf32>
      %27 = tpu.matmul %25, %26, %cst_19 {dimension_numbers = #tpu.dot_dimension_numbers<[1], [0], [0], [1], [0, 0, 1, 1], [], []>} : vector<128x256xbf16>, vector<256x256xbf16>, vector<128x256xf32> -> vector<128x256xf32>
      %c0_20 = arith.constant 0 : index
      %c0_21 = arith.constant 0 : index
      %28 = vector.load %arg6[%c0_20, %c0_21] : memref<1x256xf32, #tpu.memory_space<vmem>>, vector<1x256xf32>
      %29 = vector.broadcast %28 : vector<1x256xf32> to vector<128x256xf32>
      %30 = arith.addf %27, %29 : vector<128x256xf32>
      %31 = arith.addf %30, %16 : vector<128x256xf32>
      %cst_22 = arith.constant dense<0.000000e+00> : vector<128xf32>
      %32 = vector.multi_reduction <add>, %31, %cst_22 [1] : vector<128x256xf32> to vector<128xf32>
      %33 = vector.shape_cast %32 : vector<128xf32> to vector<128x1xf32>
      %cst_23 = arith.constant 2.560000e+02 : f32
      %34 = vector.broadcast %cst_23 : f32 to vector<128x1xf32>
      %35 = arith.divf %33, %34 : vector<128x1xf32>
      %36 = vector.broadcast %35 : vector<128x1xf32> to vector<128x256xf32>
      %37 = arith.subf %31, %36 : vector<128x256xf32>
      %38 = arith.mulf %37, %37 : vector<128x256xf32>
      %cst_24 = arith.constant dense<0.000000e+00> : vector<128xf32>
      %39 = vector.multi_reduction <add>, %38, %cst_24 [1] : vector<128x256xf32> to vector<128xf32>
      %40 = vector.shape_cast %39 : vector<128xf32> to vector<128x1xf32>
      %cst_25 = arith.constant 2.560000e+02 : f32
      %41 = vector.broadcast %cst_25 : f32 to vector<128x1xf32>
      %42 = arith.divf %40, %41 : vector<128x1xf32>
      %cst_26 = arith.constant 9.99999974E-6 : f32
      %43 = vector.broadcast %cst_26 : f32 to vector<128x1xf32>
      %44 = arith.addf %42, %43 : vector<128x1xf32>
      %45 = math.rsqrt %44 : vector<128x1xf32>
      %46 = vector.broadcast %45 : vector<128x1xf32> to vector<128x256xf32>
      %47 = arith.mulf %37, %46 : vector<128x256xf32>
      %c0_27 = arith.constant 0 : index
      %c0_28 = arith.constant 0 : index
      %48 = vector.load %arg7[%c0_27, %c0_28] : memref<1x256xf32, #tpu.memory_space<vmem>>, vector<1x256xf32>
      %49 = vector.broadcast %48 : vector<1x256xf32> to vector<128x256xf32>
      %50 = arith.mulf %47, %49 : vector<128x256xf32>
      %c0_29 = arith.constant 0 : index
      %c0_30 = arith.constant 0 : index
      %51 = vector.load %arg8[%c0_29, %c0_30] : memref<1x256xf32, #tpu.memory_space<vmem>>, vector<1x256xf32>
      %52 = vector.broadcast %51 : vector<1x256xf32> to vector<128x256xf32>
      %53 = arith.addf %50, %52 : vector<128x256xf32>
      %c0_31 = arith.constant 0 : index
      %c0_32 = arith.constant 0 : index
      %54 = vector.load %arg9[%c0_31, %c0_32] : memref<128x256xf32, #tpu.memory_space<vmem>>, vector<128x256xf32>
      tpu.vector_store %arg9[%c0_31, %c0_32], %53 {strides = array<i32>} : memref<128x256xf32, #tpu.memory_space<vmem>>, vector<128x256xf32>,
    } else {
    }
    return
  }
  func.func @transform_0(%arg0: i32, %arg1: i32) -> (i32, i32) {
    %c0_i32 = arith.constant 0 : i32
    return %arg0, %arg1 : i32, i32
  }
  func.func @transform_1(%arg0: i32, %arg1: i32) -> (i32, i32) {
    %c0_i32 = arith.constant 0 : i32
    %c0_i32_0 = arith.constant 0 : i32
    return %arg1, %c0_i32 : i32, i32
  }
  func.func @transform_2(%arg0: i32, %arg1: i32) -> (i32, i32) {
    %c0_i32 = arith.constant 0 : i32
    %c0_i32_0 = arith.constant 0 : i32
    %c0_i32_1 = arith.constant 0 : i32
    return %c0_i32, %c0_i32_0 : i32, i32
  }
  func.func @transform_3(%arg0: i32, %arg1: i32) -> (i32, i32) {
    %c0_i32 = arith.constant 0 : i32
    %c0_i32_0 = arith.constant 0 : i32
    %c0_i32_1 = arith.constant 0 : i32
    return %c0_i32, %c0_i32_0 : i32, i32
  }
  func.func @transform_4(%arg0: i32, %arg1: i32) -> (i32, i32) {
    %c0_i32 = arith.constant 0 : i32
    %c0_i32_0 = arith.constant 0 : i32
    %c0_i32_1 = arith.constant 0 : i32
    return %c0_i32, %c0_i32_0 : i32, i32
  }
  func.func @transform_5(%arg0: i32, %arg1: i32) -> (i32, i32) {
    %c0_i32 = arith.constant 0 : i32
    %c0_i32_0 = arith.constant 0 : i32
    %c0_i32_1 = arith.constant 0 : i32
    return %c0_i32, %c0_i32_0 : i32, i32
  }
  func.func @transform_6(%arg0: i32, %arg1: i32) -> (i32, i32) {
    %c0_i32 = arith.constant 0 : i32
    %c0_i32_0 = arith.constant 0 : i32
    %c0_i32_1 = arith.constant 0 : i32
    return %c0_i32, %c0_i32_0 : i32, i32
  }
  func.func @transform_7(%arg0: i32, %arg1: i32) -> (i32, i32) {
    %c0_i32 = arith.constant 0 : i32
    %c0_i32_0 = arith.constant 0 : i32
    return %arg0, %c0_i32 : i32, i32
  }
}

</mosaic_0001>

<llo_original>
// kernel: tpu_custom_call.1
$region0: #{tpu_custom_call.1}
  #allocation0 [shape = 'u32[]', space=smem, size = 0x4, offset = 0x4, fixed_abs, tag = 'smem constant byte address 0x4 - core index']
  #allocation1 [shape = 'u32[144,128]{1,0:T(1,128)}', space=vmem, size = 0x12000, scoped, tag = 'internal scratch']
  #allocation2 [shape = 'f32[128,256]{1,0:T(8,128)}', space=vmem, size = 0x20000, scoped, tag = 'scratch operand']
  %s0 = inlined_call_operand.hbm [shape: f32[512,256], index: 0, kind: input, shape index: {}]
  %s1 = inlined_call_operand.hbm [shape: bf16[256,256], index: 1, kind: input, shape index: {}]
  %s2 = inlined_call_operand.vmem [shape: f32[1,256], index: 2, kind: input, shape index: {}]
  %s3 = inlined_call_operand.hbm [shape: bf16[256,256], index: 3, kind: input, shape index: {}]
  %s4 = inlined_call_operand.vmem [shape: f32[1,256], index: 4, kind: input, shape index: {}]
  %s5 = inlined_call_operand.vmem [shape: f32[1,256], index: 5, kind: input, shape index: {}]
  %s6 = inlined_call_operand.vmem [shape: f32[1,256], index: 6, kind: input, shape index: {}]
  %s7 = inlined_call_operand.hbm [shape: f32[512,256], index: 7, kind: output, shape index: {}]
  %s8 = sld [smem:[#allocation0]]
  $region81: #{tpu_custom_call.1} parent=0
    _
  %s10 = ssub.s32 1, %s8
  %s11 = scalar_select 0, %s10, %s8
  $region1: #{tpu_custom_call.1} parent=0
    #allocation3 [shape = 'u8[262144]{0}', space=vmem, size = 0x40000, scoped, tag = 'input window, operand 0']
    #allocation4 [shape = 's32[2]{0}', space=sflag, size = 0x8, scoped, tag = 'scoped memory for tpu_custom_call.1']
    #allocation5 [shape = 's32[2]{0}', space=sflag, size = 0x8, scoped, tag = 'scoped memory for tpu_custom_call.1']
    #allocation6 [shape = 'u8[131072]{0}', space=vmem, size = 0x20000, scoped, tag = 'input window, operand 1, single buffered']
    #allocation7 [shape = 's32[1]{0}', space=sflag, size = 0x4, scoped, tag = 'scoped memory for tpu_custom_call.1']
    #allocation8 [shape = 'u8[131072]{0}', space=vmem, size = 0x20000, scoped, tag = 'input window, operand 3, single buffered']
    #allocation9 [shape = 'u8[262144]{0}', space=vmem, size = 0x40000, scoped, tag = 'output window, operand 0']
    %12 = vsyncpa [#allocation4], 0
    %s13 = scalar_lea.sflag [#allocation4], 1
    %14 = vsyncpa %s13, 0
    %15 = vsyncpa [#allocation7], 0
    %16 = vsyncpa [#allocation5], 0
    %s17 = scalar_lea.sflag [#allocation5], 1
    %18 = vsyncpa %s17, 0
    loop: start=0, step=1, limit=6
    $region2: #{tpu_custom_call.1} parent=1 // loop_pre_header
      _
    $region3: #{tpu_custom_call.1} parent=1 // loop_header
      %s20 = sphi 0, %s24
      %p21 = scmp.ge.s32.totalorder %s20, 6
      %s27 = sphi 0, %s39
      %s28 = sphi 0, %s35
      %s29 = sphi 0, %s27
      %s30 = sphi 0, %s28
      %s31 = sphi 0, %s29
      %s32 = sphi 0, %s30
      %s44 = sphi 0, %s46
      %s47 = sphi 0, %s44
      %s48 = sphi 0, %s47
      %s64 = sphi 0, %s48
      %s70 = sphi 0, %s72
      %s73 = sphi 0, %s70
      %s74 = sphi 0, %s73
      %s90 = sphi 0, %s74
      %s94 = sphi 0, %s94
      %s96 = sphi 0, %s94
      %s97 = sphi 0, %s96
      %s111 = sphi 0, %s97
      %s115 = sphi 0, %s115
      %s117 = sphi 0, %s115
      %s118 = sphi 0, %s117
      %s132 = sphi 0, %s118
      %s136 = sphi 0, %s136
      %s138 = sphi 0, %s136
      %s139 = sphi 0, %s138
      %s153 = sphi 0, %s139
      %s157 = sphi 0, %s157
      %s159 = sphi 0, %s157
      %s160 = sphi 0, %s159
      %s174 = sphi 0, %s160
      %s178 = sphi 0, %s178
      %s180 = sphi 0, %s178
      %s181 = sphi 0, %s180
      %s195 = sphi 0, %s181
      %s201 = sphi 0, %s203
      %s204 = sphi 0, %s201
      %s205 = sphi 0, %s204
      %s221 = sphi 0, %s205
    $region4: #{tpu_custom_call.1} parent=1 // loop_header_branch
      %23 = sbr.rel (%p21) target = $region8
    $region5: #{tpu_custom_call.1} parent=1 // loop_body
      %s25 = ssub.s32 %s20, 1
      %s26 = ssub.s32 %s20, 2
      %s33 = sadd.s32 1, %s28
      %p34 = scmp.ge.s32.totalorder %s33, 1
      %s35 = scalar_select %p34, 0, %s33
      %s36 = sadd.s32 1, %s27
      %s37 = scalar_select %p34, %s36, %s27
      %p38 = scmp.ge.s32.totalorder %s37, 4
      %s39 = scalar_select %p38, 0, %s37
      %s40 = ssub.s32 %s27, %s39
      %s41 = ssub.s32 %s28, %s35
      %s42 = sor.u32 %s40, %s41
      %p43 = scmp.eq.s32.totalorder %s42, 0
      %s45 = sadd.s32 %s44, 1
      %s46 = scalar_select %p43, %s44, %s45
      %p49 = pneg %p43
      %p50 = scmp.eq.s32.totalorder %s20, 3
      %p51 = por %p49, %p50
      %p52 = scmp.ne.s32.totalorder %s44, %s47
      %p53 = scmp.eq.s32.totalorder %s20, 0
      %p54 = por %p52, %p53
      %p55 = scmp.ne.s32.totalorder %s44, %s47
      %p56 = scmp.eq.s32.totalorder %s25, 3
      %p57 = por %p55, %p56
      %p58 = scmp.ne.s32.totalorder %s47, %s48
      %p59 = scmp.eq.s32.totalorder %s25, 0
      %p60 = por %p58, %p59
      %p61 = scmp.ne.s32.totalorder %s47, %s48
      %p62 = scmp.eq.s32.totalorder %s26, 3
      %p63 = por %p61, %p62
      %p65 = scmp.ne.s32.totalorder %s48, %s64
      %p66 = scmp.eq.s32.totalorder %s26, 0
      %p67 = por %p65, %p66
      %s68 = ssub.s32 %s28, %s35
      %p69 = scmp.eq.s32.totalorder %s68, 0
      %s71 = sadd.s32 %s70, 1
      %s72 = scalar_select %p69, %s70, %s71
      %p75 = pneg %p69
      %p76 = scmp.eq.s32.totalorder %s20, 3
      %p77 = por %p75, %p76
      %p78 = scmp.ne.s32.totalorder %s70, %s73
      %p79 = scmp.eq.s32.totalorder %s20, 0
      %p80 = por %p78, %p79
      %p81 = scmp.ne.s32.totalorder %s70, %s73
      %p82 = scmp.eq.s32.totalorder %s25, 3
      %p83 = por %p81, %p82
      %p84 = scmp.ne.s32.totalorder %s73, %s74
      %p85 = scmp.eq.s32.totalorder %s25, 0
      %p86 = por %p84, %p85
      %p87 = scmp.ne.s32.totalorder %s73, %s74
      %p88 = scmp.eq.s32.totalorder %s26, 3
      %p89 = por %p87, %p88
      %p91 = scmp.ne.s32.totalorder %s74, %s90
      %p92 = scmp.eq.s32.totalorder %s26, 0
      %p93 = por %p91, %p92
      %s95 = sadd.s32 %s94, 1
      %p98 = scmp.eq.s32.totalorder %s20, 3
      %p99 = scmp.ne.s32.totalorder %s94, %s96
      %p100 = scmp.eq.s32.totalorder %s20, 0
      %p101 = por %p99, %p100
      %p102 = scmp.ne.s32.totalorder %s94, %s96
      %p103 = scmp.eq.s32.totalorder %s25, 3
      %p104 = por %p102, %p103
      %p105 = scmp.ne.s32.totalorder %s96, %s97
      %p106 = scmp.eq.s32.totalorder %s25, 0
      %p107 = por %p105, %p106
      %p108 = scmp.ne.s32.totalorder %s96, %s97
      %p109 = scmp.eq.s32.totalorder %s26, 3
      %p110 = por %p108, %p109
      %p112 = scmp.ne.s32.totalorder %s97, %s111
      %p113 = scmp.eq.s32.totalorder %s26, 0
      %p114 = por %p112, %p113
      %s116 = sadd.s32 %s115, 1
      %p119 = scmp.eq.s32.totalorder %s20, 3
      %p120 = scmp.ne.s32.totalorder %s115, %s117
      %p121 = scmp.eq.s32.totalorder %s20, 0
      %p122 = por %p120, %p121
      %p123 = scmp.ne.s32.totalorder %s115, %s117
      %p124 = scmp.eq.s32.totalorder %s25, 3
      %p125 = por %p123, %p124
      %p126 = scmp.ne.s32.totalorder %s117, %s118
      %p127 = scmp.eq.s32.totalorder %s25, 0
      %p128 = por %p126, %p127
      %p129 = scmp.ne.s32.totalorder %s117, %s118
      %p130 = scmp.eq.s32.totalorder %s26, 3
      %p131 = por %p129, %p130
      %p133 = scmp.ne.s32.totalorder %s118, %s132
      %p134 = scmp.eq.s32.totalorder %s26, 0
      %p135 = por %p133, %p134
      %s137 = sadd.s32 %s136, 1
      %p140 = scmp.eq.s32.totalorder %s20, 3
      %p141 = scmp.ne.s32.totalorder %s136, %s138
      %p142 = scmp.eq.s32.totalorder %s20, 0
      %p143 = por %p141, %p142
      %p144 = scmp.ne.s32.totalorder %s136, %s138
      %p145 = scmp.eq.s32.totalorder %s25, 3
      %p146 = por %p144, %p145
      %p147 = scmp.ne.s32.totalorder %s138, %s139
      %p148 = scmp.eq.s32.totalorder %s25, 0
      %p149 = por %p147, %p148
      %p150 = scmp.ne.s32.totalorder %s138, %s139
      %p151 = scmp.eq.s32.totalorder %s26, 3
      %p152 = por %p150, %p151
      %p154 = scmp.ne.s32.totalorder %s139, %s153
      %p155 = scmp.eq.s32.totalorder %s26, 0
      %p156 = por %p154, %p155
      %s158 = sadd.s32 %s157, 1
      %p161 = scmp.eq.s32.totalorder %s20, 3
      %p162 = scmp.ne.s32.totalorder %s157, %s159
      %p163 = scmp.eq.s32.totalorder %s20, 0
      %p164 = por %p162, %p163
      %p165 = scmp.ne.s32.totalorder %s157, %s159
      %p166 = scmp.eq.s32.totalorder %s25, 3
      %p167 = por %p165, %p166
      %p168 = scmp.ne.s32.totalorder %s159, %s160
      %p169 = scmp.eq.s32.totalorder %s25, 0
      %p170 = por %p168, %p169
      %p171 = scmp.ne.s32.totalorder %s159, %s160
      %p172 = scmp.eq.s32.totalorder %s26, 3
      %p173 = por %p171, %p172
      %p175 = scmp.ne.s32.totalorder %s160, %s174
      %p176 = scmp.eq.s32.totalorder %s26, 0
      %p177 = por %p175, %p176
      %s179 = sadd.s32 %s178, 1
      %p182 = scmp.eq.s32.totalorder %s20, 3
      %p183 = scmp.ne.s32.totalorder %s178, %s180
      %p184 = scmp.eq.s32.totalorder %s20, 0
      %p185 = por %p183, %p184
      %p186 = scmp.ne.s32.totalorder %s178, %s180
      %p187 = scmp.eq.s32.totalorder %s25, 3
      %p188 = por %p186, %p187
      %p189 = scmp.ne.s32.totalorder %s180, %s181
      %p190 = scmp.eq.s32.totalorder %s25, 0
      %p191 = por %p189, %p190
      %p192 = scmp.ne.s32.totalorder %s180, %s181
      %p193 = scmp.eq.s32.totalorder %s26, 3
      %p194 = por %p192, %p193
      %p196 = scmp.ne.s32.totalorder %s181, %s195
      %p197 = scmp.eq.s32.totalorder %s26, 0
      %p198 = por %p196, %p197
      %s199 = ssub.s32 %s27, %s39
      %p200 = scmp.eq.s32.totalorder %s199, 0
      %s202 = sadd.s32 %s201, 1
      %s203 = scalar_select %p200, %s201, %s202
      %p206 = pneg %p200
      %p207 = scmp.eq.s32.totalorder %s20, 3
      %p208 = por %p206, %p207
      %p209 = scmp.ne.s32.totalorder %s201, %s204
      %p210 = scmp.eq.s32.totalorder %s20, 0
      %p211 = por %p209, %p210
      %p212 = scmp.ne.s32.totalorder %s201, %s204
      %p213 = scmp.eq.s32.totalorder %s25, 3
      %p214 = por %p212, %p213
      %p215 = scmp.ne.s32.totalorder %s204, %s205
      %p216 = scmp.eq.s32.totalorder %s25, 0
      %p217 = por %p215, %p216
      %p218 = scmp.ne.s32.totalorder %s204, %s205
      %p219 = scmp.eq.s32.totalorder %s26, 3
      %p220 = por %p218, %p219
      %p222 = scmp.ne.s32.totalorder %s205, %s221
      %p223 = scmp.eq.s32.totalorder %s26, 0
      %p224 = por %p222, %p223
      %p225 = scmp.le.s32.totalorder 1, %s20
      %p226 = scmp.lt.s32.totalorder %s20, 5
      %p227 = pnand %p225, %p226
      %p228 = pneg %p227
      // Predicated region
      $region9: #{tpu_custom_call.1} parent=5 // pred_check
        _
      $region10: #{tpu_custom_call.1} parent=5 // pred_check_branch
        %230 = sbr.rel (%p227) target = $region12
      $region11: #{tpu_custom_call.1} parent=5 // pred_region
        %s231 = ssub.s32 %s20, 1
        // Predicated region
        $region13: #{tpu_custom_call.1} parent=11 // pred_check
          %p232 = pneg %p86
        $region14: #{tpu_custom_call.1} parent=11 // pred_check_branch
          %234 = sbr.rel (%p232) target = $region16
        $region15: #{tpu_custom_call.1} parent=11 // pred_region
          %s235 = smul.u32 32, %s30
          %s237 = ssub.s32 4096, 4096
          %238 = vsyncadd [#allocation7], %s237
          %s239 = smul.addr %s235, 2
          %s240 = smul.addr %s239, 64
          %s241 = scalar_lea.hbm %s1, %s240
          %s242 = sshll.u32 [#allocation6], 4
          %s243 = int_to_ptr.vmem [resolvable:$true] %s242
          %248 = dma.hbm_to_vmem [thread:$0]  %s241, 4096, %s243, [#allocation7], 128, 128, 8
        $region16: #{tpu_custom_call.1} parent=11 // pred_fallthru
          _
        // Predicated region
        $region17: #{tpu_custom_call.1} parent=11 // pred_check
          %p249 = pneg %p107
        $region18: #{tpu_custom_call.1} parent=11 // pred_check_branch
          %251 = sbr.rel (%p249) target = $region20
        $region19: #{tpu_custom_call.1} parent=11 // pred_region
          _
        $region20: #{tpu_custom_call.1} parent=11 // pred_fallthru
          _
        // Predicated region
        $region21: #{tpu_custom_call.1} parent=11 // pred_check
          %p252 = pneg %p128
        $region22: #{tpu_custom_call.1} parent=11 // pred_check_branch
          %254 = sbr.rel (%p252) target = $region24
        $region23: #{tpu_custom_call.1} parent=11 // pred_region
          %s256 = ssub.s32 4096, 4096
          %257 = vsyncadd [#allocation7], %s256
          %s258 = sshll.u32 [#allocation8], 4
          %s259 = int_to_ptr.vmem [resolvable:$true] %s258
          %264 = dma.hbm_to_vmem [thread:$0]  %s3, 4096, %s259, [#allocation7], 128, 128, 8
        $region24: #{tpu_custom_call.1} parent=11 // pred_fallthru
          _
        // Predicated region
        $region25: #{tpu_custom_call.1} parent=11 // pred_check
          %p265 = pneg %p149
        $region26: #{tpu_custom_call.1} parent=11 // pred_check_branch
          %267 = sbr.rel (%p265) target = $region28
        $region27: #{tpu_custom_call.1} parent=11 // pred_region
          _
        $region28: #{tpu_custom_call.1} parent=11 // pred_fallthru
          _
        // Predicated region
        $region29: #{tpu_custom_call.1} parent=11 // pred_check
          %p268 = pneg %p170
        $region30: #{tpu_custom_call.1} parent=11 // pred_check_branch
          %270 = sbr.rel (%p268) target = $region32
        $region31: #{tpu_custom_call.1} parent=11 // pred_region
          _
        $region32: #{tpu_custom_call.1} parent=11 // pred_fallthru
          _
        // Predicated region
        $region33: #{tpu_custom_call.1} parent=11 // pred_check
          %p271 = pneg %p191
        $region34: #{tpu_custom_call.1} parent=11 // pred_check_branch
          %273 = sbr.rel (%p271) target = $region36
        $region35: #{tpu_custom_call.1} parent=11 // pred_region
          _
        $region36: #{tpu_custom_call.1} parent=11 // pred_fallthru
          _
      $region12: #{tpu_custom_call.1} parent=5 // pred_fallthru
        _
      %p274 = scmp.lt.s32.totalorder %s20, 4
      // Predicated region
      $region37: #{tpu_custom_call.1} parent=5 // pred_check
        %p275 = pneg %p274
      $region38: #{tpu_custom_call.1} parent=5 // pred_check_branch
        %277 = sbr.rel (%p275) target = $region40
      $region39: #{tpu_custom_call.1} parent=5 // pred_region
        // Predicated region
        $region41: #{tpu_custom_call.1} parent=39 // pred_check
          %p278 = pneg %p54
        $region42: #{tpu_custom_call.1} parent=39 // pred_check_branch
          %280 = sbr.rel (%p278) target = $region44
        $region43: #{tpu_custom_call.1} parent=39 // pred_region
          %s281 = sand.u32 %s44, 1
          %s282 = scalar_lea.sflag [#allocation4], %s281
          %s283 = sand.u32 %s44, 1
          %s284 = smul.addr %s283, 256
          %s285 = scalar_lea.vmem [#allocation3], %s284
          %s286 = smul.u32 16, %s27
          %s287 = smul.u32 2, %s28
          %s289 = ssub.s32 4096, 4096
          %290 = vsyncadd %s282, %s289
          %s291 = smul.addr %s286, 2
          %s292 = sadd.s32 %s287, %s291
          %s293 = smul.addr %s292, 128
          %s294 = scalar_lea.hbm %s0, %s293
          %s295 = sshll.u32 %s285, 4
          %s296 = int_to_ptr.vmem [resolvable:$true] %s295
          %301 = dma.hbm_to_vmem [thread:$0]  %s294, 4096, %s296, %s282, 256, 256, 16
        $region44: #{tpu_custom_call.1} parent=39 // pred_fallthru
          _
      $region40: #{tpu_custom_call.1} parent=5 // pred_fallthru
        _
      %p302 = scmp.le.s32.totalorder 1, %s20
      %p303 = scmp.lt.s32.totalorder %s20, 5
      %p304 = pnand %p302, %p303
      %p305 = pneg %p304
      // Predicated region
      $region45: #{tpu_custom_call.1} parent=5 // pred_check
        _
      $region46: #{tpu_custom_call.1} parent=5 // pred_check_branch
        %307 = sbr.rel (%p304) target = $region48
      $region47: #{tpu_custom_call.1} parent=5 // pred_region
        %s308 = ssub.s32 %s20, 1
        %s309 = sand.u32 %s47, 1
        %s310 = scalar_lea.sflag [#allocation4], %s309
        %s311 = sand.u32 %s47, 1
        %s312 = smul.addr %s311, 256
        %s313 = scalar_lea.vmem [#allocation3], %s312
        // Predicated region
        $region49: #{tpu_custom_call.1} parent=47 // pred_check
          %p314 = pneg %p60
        $region50: #{tpu_custom_call.1} parent=47 // pred_check_branch
          %316 = sbr.rel (%p314) target = $region52
        $region51: #{tpu_custom_call.1} parent=47 // pred_region
          %317 = dma.done %s310, 4096
        $region52: #{tpu_custom_call.1} parent=47 // pred_fallthru
          _
        // Predicated region
        $region53: #{tpu_custom_call.1} parent=47 // pred_check
          %p318 = pneg %p86
        $region54: #{tpu_custom_call.1} parent=47 // pred_check_branch
          %320 = sbr.rel (%p318) target = $region56
        $region55: #{tpu_custom_call.1} parent=47 // pred_region
          %321 = dma.done [#allocation7], 4096
        $region56: #{tpu_custom_call.1} parent=47 // pred_fallthru
          _
        // Predicated region
        $region57: #{tpu_custom_call.1} parent=47 // pred_check
          %p322 = pneg %p128
        $region58: #{tpu_custom_call.1} parent=47 // pred_check_branch
          %324 = sbr.rel (%p322) target = $region60
        $region59: #{tpu_custom_call.1} parent=47 // pred_region
          %325 = dma.done [#allocation7], 4096
        $region60: #{tpu_custom_call.1} parent=47 // pred_fallthru
          _
        %s326 = sand.u32 %s47, 1
        %s327 = scalar_lea.sflag [#allocation4], %s326
        %s328 = sand.u32 %s47, 1
        %s329 = smul.addr %s328, 256
        %s330 = scalar_lea.vmem [#allocation3], %s329
        %p331 = pneg %p60
        %p332 = pneg %p57
        %p333 = pneg %p86
        %p334 = pneg %p83
        %p335 = pneg %p107
        %p336 = pneg %p104
        %p337 = pneg %p128
        %p338 = pneg %p125
        %p339 = pneg %p149
        %p340 = pneg %p146
        %p341 = pneg %p170
        %p342 = pneg %p167
        %p343 = pneg %p191
        %p344 = pneg %p188
        %p345 = pneg %p217
        %p346 = pneg %p214
        %s347 = sand.u32 %s204, 1
        %s348 = scalar_lea.sflag [#allocation5], %s347
        %s349 = sand.u32 %s204, 1
        %s350 = smul.addr %s349, 256
        %s351 = scalar_lea.vmem [#allocation9], %s350
        %s352 = smul.u32 16, %s29
        %s353 = smul.u32 2, %s30
        %s354 = smul.u32 32, %s30
        %s355 = smul.u32 16, %s29
        %p356 = scmp.eq.s32.totalorder %s30, 0
        // Predicated region
        $region61: #{tpu_custom_call.1} parent=47 // pred_check
          %p357 = pneg %p356
        $region62: #{tpu_custom_call.1} parent=47 // pred_check_branch
          %359 = sbr.rel (%p357) target = $region64
        $region63: #{tpu_custom_call.1} parent=47 // pred_region
          %360 = vst [vmem:[#allocation2] sm:$0xff] 0.0
          %361 = vst [vmem:[#allocation2 + $0x8] sm:$0xff] 0.0
          %362 = vst [vmem:[#allocation2 + $0x10] sm:$0xff] 0.0
          %363 = vst [vmem:[#allocation2 + $0x18] sm:$0xff] 0.0
          %364 = vst [vmem:[#allocation2 + $0x20] sm:$0xff] 0.0
          %365 = vst [vmem:[#allocation2 + $0x28] sm:$0xff] 0.0
          %366 = vst [vmem:[#allocation2 + $0x30] sm:$0xff] 0.0
          %367 = vst [vmem:[#allocation2 + $0x38] sm:$0xff] 0.0
          %368 = vst [vmem:[#allocation2 + $0x40] sm:$0xff] 0.0
          %369 = vst [vmem:[#allocation2 + $0x48] sm:$0xff] 0.0
          %370 = vst [vmem:[#allocation2 + $0x50] sm:$0xff] 0.0
          %371 = vst [vmem:[#allocation2 + $0x58] sm:$0xff] 0.0
          %372 = vst [vmem:[#allocation2 + $0x60] sm:$0xff] 0.0
          %373 = vst [vmem:[#allocation2 + $0x68] sm:$0xff] 0.0
          %374 = vst [vmem:[#allocation2 + $0x70] sm:$0xff] 0.0
          %375 = vst [vmem:[#allocation2 + $0x78] sm:$0xff] 0.0
          %376 = vst [vmem:[#allocation2 + $0x80] sm:$0xff] 0.0
          %377 = vst [vmem:[#allocation2 + $0x88] sm:$0xff] 0.0
          %378 = vst [vmem:[#allocation2 + $0x90] sm:$0xff] 0.0
          %379 = vst [vmem:[#allocation2 + $0x98] sm:$0xff] 0.0
          %380 = vst [vmem:[#allocation2 + $0xa0] sm:$0xff] 0.0
          %381 = vst [vmem:[#allocation2 + $0xa8] sm:$0xff] 0.0
          %382 = vst [vmem:[#allocation2 + $0xb0] sm:$0xff] 0.0
          %383 = vst [vmem:[#allocation2 + $0xb8] sm:$0xff] 0.0
          %384 = vst [vmem:[#allocation2 + $0xc0] sm:$0xff] 0.0
          %385 = vst [vmem:[#allocation2 + $0xc8] sm:$0xff] 0.0
          %386 = vst [vmem:[#allocation2 + $0xd0] sm:$0xff] 0.0
          %387 = vst [vmem:[#allocation2 + $0xd8] sm:$0xff] 0.0
          %388 = vst [vmem:[#allocation2 + $0xe0] sm:$0xff] 0.0
          %389 = vst [vmem:[#allocation2 + $0xe8] sm:$0xff] 0.0
          %390 = vst [vmem:[#allocation2 + $0xf0] sm:$0xff] 0.0
          %391 = vst [vmem:[#allocation2 + $0xf8] sm:$0xff] 0.0
        $region64: #{tpu_custom_call.1} parent=47 // pred_fallthru
          _
        %v392 = vld [vmem:[%s313] sm:$0xff]
        %v393 = vld [vmem:[%s313 + $0x8] sm:$0xff]
        %v394 = vld [vmem:[%s313 + $0x10] sm:$0xff]
        %v395 = vld [vmem:[%s313 + $0x18] sm:$0xff]
        %v396 = vld [vmem:[%s313 + $0x20] sm:$0xff]
        %v397 = vld [vmem:[%s313 + $0x28] sm:$0xff]
        %v398 = vld [vmem:[%s313 + $0x30] sm:$0xff]
        %v399 = vld [vmem:[%s313 + $0x38] sm:$0xff]
        %v400 = vld [vmem:[%s313 + $0x40] sm:$0xff]
        %v401 = vld [vmem:[%s313 + $0x48] sm:$0xff]
        %v402 = vld [vmem:[%s313 + $0x50] sm:$0xff]
        %v403 = vld [vmem:[%s313 + $0x58] sm:$0xff]
        %v404 = vld [vmem:[%s313 + $0x60] sm:$0xff]
        %v405 = vld [vmem:[%s313 + $0x68] sm:$0xff]
        %v406 = vld [vmem:[%s313 + $0x70] sm:$0xff]
        %v407 = vld [vmem:[%s313 + $0x78] sm:$0xff]
        %v408 = vld [vmem:[%s313 + $0x80] sm:$0xff]
        %v409 = vld [vmem:[%s313 + $0x88] sm:$0xff]
        %v410 = vld [vmem:[%s313 + $0x90] sm:$0xff]
        %v411 = vld [vmem:[%s313 + $0x98] sm:$0xff]
        %v412 = vld [vmem:[%s313 + $0xa0] sm:$0xff]
        %v413 = vld [vmem:[%s313 + $0xa8] sm:$0xff]
        %v414 = vld [vmem:[%s313 + $0xb0] sm:$0xff]
        %v415 = vld [vmem:[%s313 + $0xb8] sm:$0xff]
        %v416 = vld [vmem:[%s313 + $0xc0] sm:$0xff]
        %v417 = vld [vmem:[%s313 + $0xc8] sm:$0xff]
        %v418 = vld [vmem:[%s313 + $0xd0] sm:$0xff]
        %v419 = vld [vmem:[%s313 + $0xd8] sm:$0xff]
        %v420 = vld [vmem:[%s313 + $0xe0] sm:$0xff]
        %v421 = vld [vmem:[%s313 + $0xe8] sm:$0xff]
        %v422 = vld [vmem:[%s313 + $0xf0] sm:$0xff]
        %v423 = vld [vmem:[%s313 + $0xf8] sm:$0xff]
        %v424 = vpack.c.bf16 %v394, %v392
        %v425 = vpack.c.bf16 %v395, %v393
        %v426 = vpack.c.bf16 %v398, %v396
        %v427 = vpack.c.bf16 %v399, %v397
        %v428 = vpack.c.bf16 %v402, %v400
        %v429 = vpack.c.bf16 %v403, %v401
        %v430 = vpack.c.bf16 %v406, %v404
        %v431 = vpack.c.bf16 %v407, %v405
        %v432 = vpack.c.bf16 %v410, %v408
        %v433 = vpack.c.bf16 %v411, %v409
        %v434 = vpack.c.bf16 %v414, %v412
        %v435 = vpack.c.bf16 %v415, %v413
        %v436 = vpack.c.bf16 %v418, %v416
        %v437 = vpack.c.bf16 %v419, %v417
        %v438 = vpack.c.bf16 %v422, %v420
        %v439 = vpack.c.bf16 %v423, %v421
        %v440 = vld [vmem:[#allocation2] sm:$0xff]
        %v441 = vld [vmem:[#allocation2 + $0x8] sm:$0xff]
        %v442 = vld [vmem:[#allocation2 + $0x10] sm:$0xff]
        %v443 = vld [vmem:[#allocation2 + $0x18] sm:$0xff]
        %v444 = vld [vmem:[#allocation2 + $0x20] sm:$0xff]
        %v445 = vld [vmem:[#allocation2 + $0x28] sm:$0xff]
        %v446 = vld [vmem:[#allocation2 + $0x30] sm:$0xff]
        %v447 = vld [vmem:[#allocation2 + $0x38] sm:$0xff]
        %v448 = vld [vmem:[#allocation2 + $0x40] sm:$0xff]
        %v449 = vld [vmem:[#allocation2 + $0x48] sm:$0xff]
        %v450 = vld [vmem:[#allocation2 + $0x50] sm:$0xff]
        %v451 = vld [vmem:[#allocation2 + $0x58] sm:$0xff]
        %v452 = vld [vmem:[#allocation2 + $0x60] sm:$0xff]
        %v453 = vld [vmem:[#allocation2 + $0x68] sm:$0xff]
        %v454 = vld [vmem:[#allocation2 + $0x70] sm:$0xff]
        %v455 = vld [vmem:[#allocation2 + $0x78] sm:$0xff]
        %v456 = vld [vmem:[#allocation2 + $0x80] sm:$0xff]
        %v457 = vld [vmem:[#allocation2 + $0x88] sm:$0xff]
        %v458 = vld [vmem:[#allocation2 + $0x90] sm:$0xff]
        %v459 = vld [vmem:[#allocation2 + $0x98] sm:$0xff]
        %v460 = vld [vmem:[#allocation2 + $0xa0] sm:$0xff]
        %v461 = vld [vmem:[#allocation2 + $0xa8] sm:$0xff]
        %v462 = vld [vmem:[#allocation2 + $0xb0] sm:$0xff]
        %v463 = vld [vmem:[#allocation2 + $0xb8] sm:$0xff]
        %v464 = vld [vmem:[#allocation2 + $0xc0] sm:$0xff]
        %v465 = vld [vmem:[#allocation2 + $0xc8] sm:$0xff]
        %v466 = vld [vmem:[#allocation2 + $0xd0] sm:$0xff]
        %v467 = vld [vmem:[#allocation2 + $0xd8] sm:$0xff]
        %v468 = vld [vmem:[#allocation2 + $0xe0] sm:$0xff]
        %v469 = vld [vmem:[#allocation2 + $0xe8] sm:$0xff]
        %v470 = vld [vmem:[#allocation2 + $0xf0] sm:$0xff]
        %v471 = vld [vmem:[#allocation2 + $0xf8] sm:$0xff]
        %v472 = vld [vmem:[#allocation6] sm:$0xff]
        %v473 = vld [vmem:[#allocation6 + $0x8] sm:$0xff]
        %v474 = vld [vmem:[#allocation6 + $0x10] sm:$0xff]
        %v475 = vld [vmem:[#allocation6 + $0x18] sm:$0xff]
        %v476 = vld [vmem:[#allocation6 + $0x20] sm:$0xff]
        %v477 = vld [vmem:[#allocation6 + $0x28] sm:$0xff]
        %v478 = vld [vmem:[#allocation6 + $0x30] sm:$0xff]
        %v479 = vld [vmem:[#allocation6 + $0x38] sm:$0xff]
        %v480 = vld [vmem:[#allocation6 + $0x40] sm:$0xff]
        %v481 = vld [vmem:[#allocation6 + $0x48] sm:$0xff]
        %v482 = vld [vmem:[#allocation6 + $0x50] sm:$0xff]
        %v483 = vld [vmem:[#allocation6 + $0x58] sm:$0xff]
        %v484 = vld [vmem:[#allocation6 + $0x60] sm:$0xff]
        %v485 = vld [vmem:[#allocation6 + $0x68] sm:$0xff]
        %v486 = vld [vmem:[#allocation6 + $0x70] sm:$0xff]
        %v487 = vld [vmem:[#allocation6 + $0x78] sm:$0xff]
        %v488 = vld [vmem:[#allocation6 + $0x80] sm:$0xff]
        %v489 = vld [vmem:[#allocation6 + $0x88] sm:$0xff]
        %v490 = vld [vmem:[#allocation6 + $0x90] sm:$0xff]
        %v491 = vld [vmem:[#allocation6 + $0x98] sm:$0xff]
        %v492 = vld [vmem:[#allocation6 + $0xa0] sm:$0xff]
        %v493 = vld [vmem:[#allocation6 + $0xa8] sm:$0xff]
        %v494 = vld [vmem:[#allocation6 + $0xb0] sm:$0xff]
        %v495 = vld [vmem:[#allocation6 + $0xb8] sm:$0xff]
        %v496 = vld [vmem:[#allocation6 + $0xc0] sm:$0xff]
        %v497 = vld [vmem:[#allocation6 + $0xc8] sm:$0xff]
        %v498 = vld [vmem:[#allocation6 + $0xd0] sm:$0xff]
        %v499 = vld [vmem:[#allocation6 + $0xd8] sm:$0xff]
        %v500 = vld [vmem:[#allocation6 + $0xe0] sm:$0xff]
        %v501 = vld [vmem:[#allocation6 + $0xe8] sm:$0xff]
        %v502 = vld [vmem:[#allocation6 + $0xf0] sm:$0xff]
        %v503 = vld [vmem:[#allocation6 + $0xf8] sm:$0xff]
        %v536 = vunpack.c.l.b16 %v472
        %v537 = vunpack.c.h.b16 %v472
        %v538 = vunpack.c.l.b16 %v473
        %v539 = vunpack.c.h.b16 %v473
        %v540 = vunpack.c.l.b16 %v474
        %v541 = vunpack.c.h.b16 %v474
        %v542 = vunpack.c.l.b16 %v475
        %v543 = vunpack.c.h.b16 %v475
        %v544 = vunpack.c.l.b16 %v476
        %v545 = vunpack.c.h.b16 %v476
        %v546 = vunpack.c.l.b16 %v477
        %v547 = vunpack.c.h.b16 %v477
        %v548 = vunpack.c.l.b16 %v478
        %v549 = vunpack.c.h.b16 %v478
        %v550 = vunpack.c.l.b16 %v479
        %v551 = vunpack.c.h.b16 %v479
        %v552 = vunpack.c.l.b16 %v480
        %v553 = vunpack.c.h.b16 %v480
        %v554 = vunpack.c.l.b16 %v481
        %v555 = vunpack.c.h.b16 %v481
        %v556 = vunpack.c.l.b16 %v482
        %v557 = vunpack.c.h.b16 %v482
        %v558 = vunpack.c.l.b16 %v483
        %v559 = vunpack.c.h.b16 %v483
        %v560 = vunpack.c.l.b16 %v484
        %v561 = vunpack.c.h.b16 %v484
        %v562 = vunpack.c.l.b16 %v485
        %v563 = vunpack.c.h.b16 %v485
        %v564 = vunpack.c.l.b16 %v486
        %v565 = vunpack.c.h.b16 %v486
        %v566 = vunpack.c.l.b16 %v487
        %v567 = vunpack.c.h.b16 %v487
        %v568 = vunpack.c.l.b16 %v488
        %v569 = vunpack.c.h.b16 %v488
        %v570 = vunpack.c.l.b16 %v489
        %v571 = vunpack.c.h.b16 %v489
        %v572 = vunpack.c.l.b16 %v490
        %v573 = vunpack.c.h.b16 %v490
        %v574 = vunpack.c.l.b16 %v491
        %v575 = vunpack.c.h.b16 %v491
        %v576 = vunpack.c.l.b16 %v492
        %v577 = vunpack.c.h.b16 %v492
        %v578 = vunpack.c.l.b16 %v493
        %v579 = vunpack.c.h.b16 %v493
        %v580 = vunpack.c.l.b16 %v494
        %v581 = vunpack.c.h.b16 %v494
        %v582 = vunpack.c.l.b16 %v495
        %v583 = vunpack.c.h.b16 %v495
        %v584 = vunpack.c.l.b16 %v496
        %v585 = vunpack.c.h.b16 %v496
        %v586 = vunpack.c.l.b16 %v497
        %v587 = vunpack.c.h.b16 %v497
        %v588 = vunpack.c.l.b16 %v498
        %v589 = vunpack.c.h.b16 %v498
        %v590 = vunpack.c.l.b16 %v499
        %v591 = vunpack.c.h.b16 %v499
        %v592 = vunpack.c.l.b16 %v500
        %v593 = vunpack.c.h.b16 %v500
        %v594 = vunpack.c.l.b16 %v501
        %v595 = vunpack.c.h.b16 %v501
        %v596 = vunpack.c.l.b16 %v502
        %v597 = vunpack.c.h.b16 %v502
        %v598 = vunpack.c.l.b16 %v503
        %v599 = vunpack.c.h.b16 %v503
        %v600 = vpack.c.b16 %v538, %v536
        %v601 = vpack.c.b16 %v539, %v537
        %v602 = vpack.c.b16 %v542, %v540
        %v603 = vpack.c.b16 %v543, %v541
        %v604 = vpack.c.b16 %v546, %v544
        %v605 = vpack.c.b16 %v547, %v545
        %v606 = vpack.c.b16 %v550, %v548
        %v607 = vpack.c.b16 %v551, %v549
        %v608 = vpack.c.b16 %v554, %v552
        %v609 = vpack.c.b16 %v555, %v553
        %v610 = vpack.c.b16 %v558, %v556
        %v611 = vpack.c.b16 %v559, %v557
        %v612 = vpack.c.b16 %v562, %v560
        %v613 = vpack.c.b16 %v563, %v561
        %v614 = vpack.c.b16 %v566, %v564
        %v615 = vpack.c.b16 %v567, %v565
        %v616 = vpack.c.b16 %v570, %v568
        %v617 = vpack.c.b16 %v571, %v569
        %v618 = vpack.c.b16 %v574, %v572
        %v619 = vpack.c.b16 %v575, %v573
        %v620 = vpack.c.b16 %v578, %v576
        %v621 = vpack.c.b16 %v579, %v577
        %v622 = vpack.c.b16 %v582, %v580
        %v623 = vpack.c.b16 %v583, %v581
        %v624 = vpack.c.b16 %v586, %v584
        %v625 = vpack.c.b16 %v587, %v585
        %v626 = vpack.c.b16 %v590, %v588
        %v627 = vpack.c.b16 %v591, %v589
        %v628 = vpack.c.b16 %v594, %v592
        %v629 = vpack.c.b16 %v595, %v593
        %v630 = vpack.c.b16 %v598, %v596
        %v631 = vpack.c.b16 %v599, %v597
        %664 = vmatprep.subr.bf16.mxu0 %v601
        %665 = vmatpush1.bf16.msra.mxu0 %v600
        %666 = vmatprep.subr.bf16.mxu0 %v603
        %667 = vmatpush1.bf16.msra.mxu0 %v602
        %668 = vmatprep.subr.bf16.mxu0 %v605
        %669 = vmatpush1.bf16.msra.mxu0 %v604
        %670 = vmatprep.subr.bf16.mxu0 %v607
        %671 = vmatpush1.bf16.msra.mxu0 %v606
        %672 = vmatprep.subr.bf16.mxu0 %v609
        %673 = vmatpush1.bf16.msra.mxu0 %v608
        %674 = vmatprep.subr.bf16.mxu0 %v611
        %675 = vmatpush1.bf16.msra.mxu0 %v610
        %676 = vmatprep.subr.bf16.mxu0 %v613
        %677 = vmatpush1.bf16.msra.mxu0 %v612
        %678 = vmatprep.subr.bf16.mxu0 %v615
        %679 = vmatpush1.bf16.msra.mxu0 %v614
        %680 = vmatprep.subr.bf16.mxu0 %v617
        %681 = vmatpush1.bf16.msra.mxu0 %v616
        %682 = vmatprep.subr.bf16.mxu0 %v619
        %683 = vmatpush1.bf16.msra.mxu0 %v618
        %684 = vmatprep.subr.bf16.mxu0 %v621
        %685 = vmatpush1.bf16.msra.mxu0 %v620
        %686 = vmatprep.subr.bf16.mxu0 %v623
        %687 = vmatpush1.bf16.msra.mxu0 %v622
        %688 = vmatprep.subr.bf16.mxu0 %v625
        %689 = vmatpush1.bf16.msra.mxu0 %v624
        %690 = vmatprep.subr.bf16.mxu0 %v627
        %691 = vmatpush1.bf16.msra.mxu0 %v626
        %692 = vmatprep.subr.bf16.mxu0 %v629
        %693 = vmatpush1.bf16.msra.mxu0 %v628
        %694 = vmatprep.subr.bf16.mxu0 %v631
        %695 = vmatpush1.bf16.msra.mxu0 %v630
        %696 = vmatprep.mubr.bf16.mxu0 %v425
        %697 = vmatmul.mubr.bf16.gmra.mrb[0].mxu0 %v424
        %v698 = vpop.f32.mrb[0].mxu0
        %v699 = vadd.f32 0.0, %v698
        %v700 = vpop.f32.mrb[0].mxu0
        %v701 = vadd.f32 0.0, %v700
        %v702 = vpop.f32.mrb[0].mxu0
        %v703 = vadd.f32 0.0, %v702
        %v704 = vpop.f32.mrb[0].mxu0
        %v705 = vadd.f32 0.0, %v704
        %706 = vmatprep.mubr.bf16.mxu0 %v427
        %707 = vmatmul.mubr.bf16.gmra.mrb[0].mxu0 %v426
        %v708 = vpop.f32.mrb[0].mxu0
        %v709 = vadd.f32 0.0, %v708
        %v710 = vpop.f32.mrb[0].mxu0
        %v711 = vadd.f32 0.0, %v710
        %v712 = vpop.f32.mrb[0].mxu0
        %v713 = vadd.f32 0.0, %v712
        %v714 = vpop.f32.mrb[0].mxu0
        %v715 = vadd.f32 0.0, %v714
        %716 = vmatprep.mubr.bf16.mxu0 %v429
        %717 = vmatmul.mubr.bf16.gmra.mrb[0].mxu0 %v428
        %v718 = vpop.f32.mrb[0].mxu0
        %v719 = vadd.f32 0.0, %v718
        %v720 = vpop.f32.mrb[0].mxu0
        %v721 = vadd.f32 0.0, %v720
        %v722 = vpop.f32.mrb[0].mxu0
        %v723 = vadd.f32 0.0, %v722
        %v724 = vpop.f32.mrb[0].mxu0
        %v725 = vadd.f32 0.0, %v724
        %726 = vmatprep.mubr.bf16.mxu0 %v431
        %727 = vmatmul.mubr.bf16.gmra.mrb[0].mxu0 %v430
        %v728 = vpop.f32.mrb[0].mxu0
        %v729 = vadd.f32 0.0, %v728
        %v730 = vpop.f32.mrb[0].mxu0
        %v731 = vadd.f32 0.0, %v730
        %v732 = vpop.f32.mrb[0].mxu0
        %v733 = vadd.f32 0.0, %v732
        %v734 = vpop.f32.mrb[0].mxu0
        %v735 = vadd.f32 0.0, %v734
        %736 = vmatprep.mubr.bf16.mxu0 %v433
        %737 = vmatmul.mubr.bf16.gmra.mrb[0].mxu0 %v432
        %v738 = vpop.f32.mrb[0].mxu0
        %v739 = vadd.f32 0.0, %v738
        %v740 = vpop.f32.mrb[0].mxu0
        %v741 = vadd.f32 0.0, %v740
        %v742 = vpop.f32.mrb[0].mxu0
        %v743 = vadd.f32 0.0, %v742
        %v744 = vpop.f32.mrb[0].mxu0
        %v745 = vadd.f32 0.0, %v744
        %746 = vmatprep.mubr.bf16.mxu0 %v435
        %747 = vmatmul.mubr.bf16.gmra.mrb[0].mxu0 %v434
        %v748 = vpop.f32.mrb[0].mxu0
        %v749 = vadd.f32 0.0, %v748
        %v750 = vpop.f32.mrb[0].mxu0
        %v751 = vadd.f32 0.0, %v750
        %v752 = vpop.f32.mrb[0].mxu0
        %v753 = vadd.f32 0.0, %v752
        %v754 = vpop.f32.mrb[0].mxu0
        %v755 = vadd.f32 0.0, %v754
        %756 = vmatprep.mubr.bf16.mxu0 %v437
        %757 = vmatmul.mubr.bf16.gmra.mrb[0].mxu0 %v436
        %v758 = vpop.f32.mrb[0].mxu0
        %v759 = vadd.f32 0.0, %v758
        %v760 = vpop.f32.mrb[0].mxu0
        %v761 = vadd.f32 0.0, %v760
        %v762 = vpop.f32.mrb[0].mxu0
        %v763 = vadd.f32 0.0, %v762
        %v764 = vpop.f32.mrb[0].mxu0
        %v765 = vadd.f32 0.0, %v764
        %766 = vmatprep.mubr.bf16.mxu0 %v439
        %767 = vmatmul.mubr.bf16.gmra.mrb[0].mxu0 %v438
        %v768 = vpop.f32.mrb[0].mxu0
        %v769 = vadd.f32 0.0, %v768
        %v770 = vpop.f32.mrb[0].mxu0
        %v771 = vadd.f32 0.0, %v770
        %v772 = vpop.f32.mrb[0].mxu0
        %v773 = vadd.f32 0.0, %v772
        %v774 = vpop.f32.mrb[0].mxu0
        %v775 = vadd.f32 0.0, %v774
        %776 = vdwg.mxu0
        %v777 = vadd.f32 %v440, %v699
        %v778 = vadd.f32 %v441, %v701
        %v779 = vadd.f32 %v442, %v703
        %v780 = vadd.f32 %v443, %v705
        %v781 = vadd.f32 %v444, %v709
        %v782 = vadd.f32 %v445, %v711
        %v783 = vadd.f32 %v446, %v713
        %v784 = vadd.f32 %v447, %v715
        %v785 = vadd.f32 %v448, %v719
        %v786 = vadd.f32 %v449, %v721
        %v787 = vadd.f32 %v450, %v723
        %v788 = vadd.f32 %v451, %v725
        %v789 = vadd.f32 %v452, %v729
        %v790 = vadd.f32 %v453, %v731
        %v791 = vadd.f32 %v454, %v733
        %v792 = vadd.f32 %v455, %v735
        %v793 = vadd.f32 %v456, %v739
        %v794 = vadd.f32 %v457, %v741
        %v795 = vadd.f32 %v458, %v743
        %v796 = vadd.f32 %v459, %v745
        %v797 = vadd.f32 %v460, %v749
        %v798 = vadd.f32 %v461, %v751
        %v799 = vadd.f32 %v462, %v753
        %v800 = vadd.f32 %v463, %v755
        %v801 = vadd.f32 %v464, %v759
        %v802 = vadd.f32 %v465, %v761
        %v803 = vadd.f32 %v466, %v763
        %v804 = vadd.f32 %v467, %v765
        %v805 = vadd.f32 %v468, %v769
        %v806 = vadd.f32 %v469, %v771
        %v807 = vadd.f32 %v470, %v773
        %v808 = vadd.f32 %v471, %v775
        %809 = vst [vmem:[#allocation2] sm:$0xff] %v777
        %810 = vst [vmem:[#allocation2 + $0x8] sm:$0xff] %v778
        %811 = vst [vmem:[#allocation2 + $0x10] sm:$0xff] %v779
        %812 = vst [vmem:[#allocation2 + $0x18] sm:$0xff] %v780
        %813 = vst [vmem:[#allocation2 + $0x20] sm:$0xff] %v781
        %814 = vst [vmem:[#allocation2 + $0x28] sm:$0xff] %v782
        %815 = vst [vmem:[#allocation2 + $0x30] sm:$0xff] %v783
        %816 = vst [vmem:[#allocation2 + $0x38] sm:$0xff] %v784
        %817 = vst [vmem:[#allocation2 + $0x40] sm:$0xff] %v785
        %818 = vst [vmem:[#allocation2 + $0x48] sm:$0xff] %v786
        %819 = vst [vmem:[#allocation2 + $0x50] sm:$0xff] %v787
        %820 = vst [vmem:[#allocation2 + $0x58] sm:$0xff] %v788
        %821 = vst [vmem:[#allocation2 + $0x60] sm:$0xff] %v789
        %822 = vst [vmem:[#allocation2 + $0x68] sm:$0xff] %v790
        %823 = vst [vmem:[#allocation2 + $0x70] sm:$0xff] %v791
        %824 = vst [vmem:[#allocation2 + $0x78] sm:$0xff] %v792
        %825 = vst [vmem:[#allocation2 + $0x80] sm:$0xff] %v793
        %826 = vst [vmem:[#allocation2 + $0x88] sm:$0xff] %v794
        %827 = vst [vmem:[#allocation2 + $0x90] sm:$0xff] %v795
        %828 = vst [vmem:[#allocation2 + $0x98] sm:$0xff] %v796
        %829 = vst [vmem:[#allocation2 + $0xa0] sm:$0xff] %v797
        %830 = vst [vmem:[#allocation2 + $0xa8] sm:$0xff] %v798
        %831 = vst [vmem:[#allocation2 + $0xb0] sm:$0xff] %v799
        %832 = vst [vmem:[#allocation2 + $0xb8] sm:$0xff] %v800
        %833 = vst [vmem:[#allocation2 + $0xc0] sm:$0xff] %v801
        %834 = vst [vmem:[#allocation2 + $0xc8] sm:$0xff] %v802
        %835 = vst [vmem:[#allocation2 + $0xd0] sm:$0xff] %v803
        %836 = vst [vmem:[#allocation2 + $0xd8] sm:$0xff] %v804
        %837 = vst [vmem:[#allocation2 + $0xe0] sm:$0xff] %v805
        %838 = vst [vmem:[#allocation2 + $0xe8] sm:$0xff] %v806
        %839 = vst [vmem:[#allocation2 + $0xf0] sm:$0xff] %v807
        %840 = vst [vmem:[#allocation2 + $0xf8] sm:$0xff] %v808
        // Predicated region
        $region65: #{tpu_custom_call.1} parent=47 // pred_check
          %p841 = pneg %p356
        $region66: #{tpu_custom_call.1} parent=47 // pred_check_branch
          %843 = sbr.rel (%p841) target = $region68
        $region67: #{tpu_custom_call.1} parent=47 // pred_region
          %v844 = vld [vmem:[#allocation2] sm:$0xff]
          %v845 = vld [vmem:[#allocation2 + $0x8] sm:$0xff]
          %v846 = vld [vmem:[#allocation2 + $0x10] sm:$0xff]
          %v847 = vld [vmem:[#allocation2 + $0x18] sm:$0xff]
          %v848 = vld [vmem:[#allocation2 + $0x20] sm:$0xff]
          %v849 = vld [vmem:[#allocation2 + $0x28] sm:$0xff]
          %v850 = vld [vmem:[#allocation2 + $0x30] sm:$0xff]
          %v851 = vld [vmem:[#allocation2 + $0x38] sm:$0xff]
          %v852 = vld [vmem:[#allocation2 + $0x40] sm:$0xff]
          %v853 = vld [vmem:[#allocation2 + $0x48] sm:$0xff]
          %v854 = vld [vmem:[#allocation2 + $0x50] sm:$0xff]
          %v855 = vld [vmem:[#allocation2 + $0x58] sm:$0xff]
          %v856 = vld [vmem:[#allocation2 + $0x60] sm:$0xff]
          %v857 = vld [vmem:[#allocation2 + $0x68] sm:$0xff]
          %v858 = vld [vmem:[#allocation2 + $0x70] sm:$0xff]
          %v859 = vld [vmem:[#allocation2 + $0x78] sm:$0xff]
          %v860 = vld [vmem:[#allocation2 + $0x80] sm:$0xff]
          %v861 = vld [vmem:[#allocation2 + $0x88] sm:$0xff]
          %v862 = vld [vmem:[#allocation2 + $0x90] sm:$0xff]
          %v863 = vld [vmem:[#allocation2 + $0x98] sm:$0xff]
          %v864 = vld [vmem:[#allocation2 + $0xa0] sm:$0xff]
          %v865 = vld [vmem:[#allocation2 + $0xa8] sm:$0xff]
          %v866 = vld [vmem:[#allocation2 + $0xb0] sm:$0xff]
          %v867 = vld [vmem:[#allocation2 + $0xb8] sm:$0xff]
          %v868 = vld [vmem:[#allocation2 + $0xc0] sm:$0xff]
          %v869 = vld [vmem:[#allocation2 + $0xc8] sm:$0xff]
          %v870 = vld [vmem:[#allocation2 + $0xd0] sm:$0xff]
          %v871 = vld [vmem:[#allocation2 + $0xd8] sm:$0xff]
          %v872 = vld [vmem:[#allocation2 + $0xe0] sm:$0xff]
          %v873 = vld [vmem:[#allocation2 + $0xe8] sm:$0xff]
          %v874 = vld [vmem:[#allocation2 + $0xf0] sm:$0xff]
          %v875 = vld [vmem:[#allocation2 + $0xf8] sm:$0xff]
          %v876 = vld [vmem:[%s2] sm:$0x3]
          %v878 = vlaneseq
          %v879 = vshrl.u32 %v878, 7
          %v880 = vsub.s32 0, %v879
          %v881 = vrot.slane %v876, %v880
          %v882 = vlaneseq
          %v883 = vshrl.u32 %v882, 7
          %v884 = vsub.s32 1, %v883
          %v885 = vrot.slane %v876, %v884
          %v888 = vadd.f32 %v844, %v881
          %v889 = vadd.f32 %v845, %v885
          %v890 = vadd.f32 %v846, %v881
          %v891 = vadd.f32 %v847, %v885
          %v892 = vadd.f32 %v848, %v881
          %v893 = vadd.f32 %v849, %v885
          %v894 = vadd.f32 %v850, %v881
          %v895 = vadd.f32 %v851, %v885
          %v896 = vadd.f32 %v852, %v881
          %v897 = vadd.f32 %v853, %v885
          %v898 = vadd.f32 %v854, %v881
          %v899 = vadd.f32 %v855, %v885
          %v900 = vadd.f32 %v856, %v881
          %v901 = vadd.f32 %v857, %v885
          %v902 = vadd.f32 %v858, %v881
          %v903 = vadd.f32 %v859, %v885
          %v904 = vadd.f32 %v860, %v881
          %v905 = vadd.f32 %v861, %v885
          %v906 = vadd.f32 %v862, %v881
          %v907 = vadd.f32 %v863, %v885
          %v908 = vadd.f32 %v864, %v881
          %v909 = vadd.f32 %v865, %v885
          %v910 = vadd.f32 %v866, %v881
          %v911 = vadd.f32 %v867, %v885
          %v912 = vadd.f32 %v868, %v881
          %v913 = vadd.f32 %v869, %v885
          %v914 = vadd.f32 %v870, %v881
          %v915 = vadd.f32 %v871, %v885
          %v916 = vadd.f32 %v872, %v881
          %v917 = vadd.f32 %v873, %v885
          %v918 = vadd.f32 %v874, %v881
          %v919 = vadd.f32 %v875, %v885
          %v920 = vmul.f32 %v888, 0.5
          %v921 = vmul.f32 %v889, 0.5
          %v922 = vmul.f32 %v890, 0.5
          %v923 = vmul.f32 %v891, 0.5
          %v924 = vmul.f32 %v892, 0.5
          %v925 = vmul.f32 %v893, 0.5
          %v926 = vmul.f32 %v894, 0.5
          %v927 = vmul.f32 %v895, 0.5
          %v928 = vmul.f32 %v896, 0.5
          %v929 = vmul.f32 %v897, 0.5
          %v930 = vmul.f32 %v898, 0.5
          %v931 = vmul.f32 %v899, 0.5
          %v932 = vmul.f32 %v900, 0.5
          %v933 = vmul.f32 %v901, 0.5
          %v934 = vmul.f32 %v902, 0.5
          %v935 = vmul.f32 %v903, 0.5
          %v936 = vmul.f32 %v904, 0.5
          %v937 = vmul.f32 %v905, 0.5
          %v938 = vmul.f32 %v906, 0.5
          %v939 = vmul.f32 %v907, 0.5
          %v940 = vmul.f32 %v908, 0.5
          %v941 = vmul.f32 %v909, 0.5
          %v942 = vmul.f32 %v910, 0.5
          %v943 = vmul.f32 %v911, 0.5
          %v944 = vmul.f32 %v912, 0.5
          %v945 = vmul.f32 %v913, 0.5
          %v946 = vmul.f32 %v914, 0.5
          %v947 = vmul.f32 %v915, 0.5
          %v948 = vmul.f32 %v916, 0.5
          %v949 = vmul.f32 %v917, 0.5
          %v950 = vmul.f32 %v918, 0.5
          %v951 = vmul.f32 %v919, 0.5
          %v952 = vmul.f32 %v888, 0.70710677
          %v953 = vmul.f32 %v889, 0.70710677
          %v954 = vmul.f32 %v890, 0.70710677
          %v955 = vmul.f32 %v891, 0.70710677
          %v956 = vmul.f32 %v892, 0.70710677
          %v957 = vmul.f32 %v893, 0.70710677
          %v958 = vmul.f32 %v894, 0.70710677
          %v959 = vmul.f32 %v895, 0.70710677
          %v960 = vmul.f32 %v896, 0.70710677
          %v961 = vmul.f32 %v897, 0.70710677
          %v962 = vmul.f32 %v898, 0.70710677
          %v963 = vmul.f32 %v899, 0.70710677
          %v964 = vmul.f32 %v900, 0.70710677
          %v965 = vmul.f32 %v901, 0.70710677
          %v966 = vmul.f32 %v902, 0.70710677
          %v967 = vmul.f32 %v903, 0.70710677
          %v968 = vmul.f32 %v904, 0.70710677
          %v969 = vmul.f32 %v905, 0.70710677
          %v970 = vmul.f32 %v906, 0.70710677
          %v971 = vmul.f32 %v907, 0.70710677
          %v972 = vmul.f32 %v908, 0.70710677
          %v973 = vmul.f32 %v909, 0.70710677
          %v974 = vmul.f32 %v910, 0.70710677
          %v975 = vmul.f32 %v911, 0.70710677
          %v976 = vmul.f32 %v912, 0.70710677
          %v977 = vmul.f32 %v913, 0.70710677
          %v978 = vmul.f32 %v914, 0.70710677
          %v979 = vmul.f32 %v915, 0.70710677
          %v980 = vmul.f32 %v916, 0.70710677
          %v981 = vmul.f32 %v917, 0.70710677
          %v982 = vmul.f32 %v918, 0.70710677
          %v983 = vmul.f32 %v919, 0.70710677
          %v984 = verf.f32.pop %v952
          %v985 = verf.f32.pop %v953
          %v986 = verf.f32.pop %v954
          %v987 = verf.f32.pop %v955
          %v988 = verf.f32.pop %v956
          %v989 = verf.f32.pop %v957
          %v990 = verf.f32.pop %v958
          %v991 = verf.f32.pop %v959
          %v992 = verf.f32.pop %v960
          %v993 = verf.f32.pop %v961
          %v994 = verf.f32.pop %v962
          %v995 = verf.f32.pop %v963
          %v996 = verf.f32.pop %v964
          %v997 = verf.f32.pop %v965
          %v998 = verf.f32.pop %v966
          %v999 = verf.f32.pop %v967
          %v1000 = verf.f32.pop %v968
          %v1001 = verf.f32.pop %v969
          %v1002 = verf.f32.pop %v970
          %v1003 = verf.f32.pop %v971
          %v1004 = verf.f32.pop %v972
          %v1005 = verf.f32.pop %v973
          %v1006 = verf.f32.pop %v974
          %v1007 = verf.f32.pop %v975
          %v1008 = verf.f32.pop %v976
          %v1009 = verf.f32.pop %v977
          %v1010 = verf.f32.pop %v978
          %v1011 = verf.f32.pop %v979
          %v1012 = verf.f32.pop %v980
          %v1013 = verf.f32.pop %v981
          %v1014 = verf.f32.pop %v982
          %v1015 = verf.f32.pop %v983
          %v1016 = vadd.f32 %v984, 1.0
          %v1017 = vadd.f32 %v985, 1.0
          %v1018 = vadd.f32 %v986, 1.0
          %v1019 = vadd.f32 %v987, 1.0
          %v1020 = vadd.f32 %v988, 1.0
          %v1021 = vadd.f32 %v989, 1.0
          %v1022 = vadd.f32 %v990, 1.0
          %v1023 = vadd.f32 %v991, 1.0
          %v1024 = vadd.f32 %v992, 1.0
          %v1025 = vadd.f32 %v993, 1.0
          %v1026 = vadd.f32 %v994, 1.0
          %v1027 = vadd.f32 %v995, 1.0
          %v1028 = vadd.f32 %v996, 1.0
          %v1029 = vadd.f32 %v997, 1.0
          %v1030 = vadd.f32 %v998, 1.0
          %v1031 = vadd.f32 %v999, 1.0
          %v1032 = vadd.f32 %v1000, 1.0
          %v1033 = vadd.f32 %v1001, 1.0
          %v1034 = vadd.f32 %v1002, 1.0
          %v1035 = vadd.f32 %v1003, 1.0
          %v1036 = vadd.f32 %v1004, 1.0
          %v1037 = vadd.f32 %v1005, 1.0
          %v1038 = vadd.f32 %v1006, 1.0
          %v1039 = vadd.f32 %v1007, 1.0
          %v1040 = vadd.f32 %v1008, 1.0
          %v1041 = vadd.f32 %v1009, 1.0
          %v1042 = vadd.f32 %v1010, 1.0
          %v1043 = vadd.f32 %v1011, 1.0
          %v1044 = vadd.f32 %v1012, 1.0
          %v1045 = vadd.f32 %v1013, 1.0
          %v1046 = vadd.f32 %v1014, 1.0
          %v1047 = vadd.f32 %v1015, 1.0
          %v1048 = vmul.f32 %v920, %v1016
          %v1049 = vmul.f32 %v921, %v1017
          %v1050 = vmul.f32 %v922, %v1018
          %v1051 = vmul.f32 %v923, %v1019
          %v1052 = vmul.f32 %v924, %v1020
          %v1053 = vmul.f32 %v925, %v1021
          %v1054 = vmul.f32 %v926, %v1022
          %v1055 = vmul.f32 %v927, %v1023
          %v1056 = vmul.f32 %v928, %v1024
          %v1057 = vmul.f32 %v929, %v1025
          %v1058 = vmul.f32 %v930, %v1026
          %v1059 = vmul.f32 %v931, %v1027
          %v1060 = vmul.f32 %v932, %v1028
          %v1061 = vmul.f32 %v933, %v1029
          %v1062 = vmul.f32 %v934, %v1030
          %v1063 = vmul.f32 %v935, %v1031
          %v1064 = vmul.f32 %v936, %v1032
          %v1065 = vmul.f32 %v937, %v1033
          %v1066 = vmul.f32 %v938, %v1034
          %v1067 = vmul.f32 %v939, %v1035
          %v1068 = vmul.f32 %v940, %v1036
          %v1069 = vmul.f32 %v941, %v1037
          %v1070 = vmul.f32 %v942, %v1038
          %v1071 = vmul.f32 %v943, %v1039
          %v1072 = vmul.f32 %v944, %v1040
          %v1073 = vmul.f32 %v945, %v1041
          %v1074 = vmul.f32 %v946, %v1042
          %v1075 = vmul.f32 %v947, %v1043
          %v1076 = vmul.f32 %v948, %v1044
          %v1077 = vmul.f32 %v949, %v1045
          %v1078 = vmul.f32 %v950, %v1046
          %v1079 = vmul.f32 %v951, %v1047
          %v1080 = vpack.c.bf16 %v1050, %v1048
          %v1081 = vpack.c.bf16 %v1051, %v1049
          %v1082 = vpack.c.bf16 %v1054, %v1052
          %v1083 = vpack.c.bf16 %v1055, %v1053
          %v1084 = vpack.c.bf16 %v1058, %v1056
          %v1085 = vpack.c.bf16 %v1059, %v1057
          %v1086 = vpack.c.bf16 %v1062, %v1060
          %v1087 = vpack.c.bf16 %v1063, %v1061
          %v1088 = vpack.c.bf16 %v1066, %v1064
          %v1089 = vpack.c.bf16 %v1067, %v1065
          %v1090 = vpack.c.bf16 %v1070, %v1068
          %v1091 = vpack.c.bf16 %v1071, %v1069
          %v1092 = vpack.c.bf16 %v1074, %v1072
          %v1093 = vpack.c.bf16 %v1075, %v1073
          %v1094 = vpack.c.bf16 %v1078, %v1076
          %v1095 = vpack.c.bf16 %v1079, %v1077
          %v1096 = vld [vmem:[#allocation8] sm:$0xff]
          %v1097 = vld [vmem:[#allocation8 + $0x8] sm:$0xff]
          %v1098 = vld [vmem:[#allocation8 + $0x10] sm:$0xff]
          %v1099 = vld [vmem:[#allocation8 + $0x18] sm:$0xff]
          %v1100 = vld [vmem:[#allocation8 + $0x20] sm:$0xff]
          %v1101 = vld [vmem:[#allocation8 + $0x28] sm:$0xff]
          %v1102 = vld [vmem:[#allocation8 + $0x30] sm:$0xff]
          %v1103 = vld [vmem:[#allocation8 + $0x38] sm:$0xff]
          %v1104 = vld [vmem:[#allocation8 + $0x40] sm:$0xff]
          %v1105 = vld [vmem:[#allocation8 + $0x48] sm:$0xff]
          %v1106 = vld [vmem:[#allocation8 + $0x50] sm:$0xff]
          %v1107 = vld [vmem:[#allocation8 + $0x58] sm:$0xff]
          %v1108 = vld [vmem:[#allocation8 + $0x60] sm:$0xff]
          %v1109 = vld [vmem:[#allocation8 + $0x68] sm:$0xff]
          %v1110 = vld [vmem:[#allocation8 + $0x70] sm:$0xff]
          %v1111 = vld [vmem:[#allocation8 + $0x78] sm:$0xff]
          %v1112 = vld [vmem:[#allocation8 + $0x80] sm:$0xff]
          %v1113 = vld [vmem:[#allocation8 + $0x88] sm:$0xff]
          %v1114 = vld [vmem:[#allocation8 + $0x90] sm:$0xff]
          %v1115 = vld [vmem:[#allocation8 + $0x98] sm:$0xff]
          %v1116 = vld [vmem:[#allocation8 + $0xa0] sm:$0xff]
          %v1117 = vld [vmem:[#allocation8 + $0xa8] sm:$0xff]
          %v1118 = vld [vmem:[#allocation8 + $0xb0] sm:$0xff]
          %v1119 = vld [vmem:[#allocation8 + $0xb8] sm:$0xff]
          %v1120 = vld [vmem:[#allocation8 + $0xc0] sm:$0xff]
          %v1121 = vld [vmem:[#allocation8 + $0xc8] sm:$0xff]
          %v1122 = vld [vmem:[#allocation8 + $0xd0] sm:$0xff]
          %v1123 = vld [vmem:[#allocation8 + $0xd8] sm:$0xff]
          %v1124 = vld [vmem:[#allocation8 + $0xe0] sm:$0xff]
          %v1125 = vld [vmem:[#allocation8 + $0xe8] sm:$0xff]
          %v1126 = vld [vmem:[#allocation8 + $0xf0] sm:$0xff]
          %v1127 = vld [vmem:[#allocation8 + $0xf8] sm:$0xff]
          %v1128 = vld [vmem:[%s4] sm:$0x3]
          %v1130 = vlaneseq
          %v1131 = vshrl.u32 %v1130, 7
          %v1132 = vsub.s32 0, %v1131
          %v1133 = vrot.slane %v1128, %v1132
          %v1134 = vlaneseq
          %v1135 = vshrl.u32 %v1134, 7
          %v1136 = vsub.s32 1, %v1135
          %v1137 = vrot.slane %v1128, %v1136
          %v1172 = vunpack.c.l.b16 %v1096
          %v1173 = vunpack.c.h.b16 %v1096
          %v1174 = vunpack.c.l.b16 %v1097
          %v1175 = vunpack.c.h.b16 %v1097
          %v1176 = vunpack.c.l.b16 %v1098
          %v1177 = vunpack.c.h.b16 %v1098
          %v1178 = vunpack.c.l.b16 %v1099
          %v1179 = vunpack.c.h.b16 %v1099
          %v1180 = vunpack.c.l.b16 %v1100
          %v1181 = vunpack.c.h.b16 %v1100
          %v1182 = vunpack.c.l.b16 %v1101
          %v1183 = vunpack.c.h.b16 %v1101
          %v1184 = vunpack.c.l.b16 %v1102
          %v1185 = vunpack.c.h.b16 %v1102
          %v1186 = vunpack.c.l.b16 %v1103
          %v1187 = vunpack.c.h.b16 %v1103
          %v1188 = vunpack.c.l.b16 %v1104
          %v1189 = vunpack.c.h.b16 %v1104
          %v1190 = vunpack.c.l.b16 %v1105
          %v1191 = vunpack.c.h.b16 %v1105
          %v1192 = vunpack.c.l.b16 %v1106
          %v1193 = vunpack.c.h.b16 %v1106
          %v1194 = vunpack.c.l.b16 %v1107
          %v1195 = vunpack.c.h.b16 %v1107
          %v1196 = vunpack.c.l.b16 %v1108
          %v1197 = vunpack.c.h.b16 %v1108
          %v1198 = vunpack.c.l.b16 %v1109
          %v1199 = vunpack.c.h.b16 %v1109
          %v1200 = vunpack.c.l.b16 %v1110
          %v1201 = vunpack.c.h.b16 %v1110
          %v1202 = vunpack.c.l.b16 %v1111
          %v1203 = vunpack.c.h.b16 %v1111
          %v1204 = vunpack.c.l.b16 %v1112
          %v1205 = vunpack.c.h.b16 %v1112
          %v1206 = vunpack.c.l.b16 %v1113
          %v1207 = vunpack.c.h.b16 %v1113
          %v1208 = vunpack.c.l.b16 %v1114
          %v1209 = vunpack.c.h.b16 %v1114
          %v1210 = vunpack.c.l.b16 %v1115
          %v1211 = vunpack.c.h.b16 %v1115
          %v1212 = vunpack.c.l.b16 %v1116
          %v1213 = vunpack.c.h.b16 %v1116
          %v1214 = vunpack.c.l.b16 %v1117
          %v1215 = vunpack.c.h.b16 %v1117
          %v1216 = vunpack.c.l.b16 %v1118
          %v1217 = vunpack.c.h.b16 %v1118
          %v1218 = vunpack.c.l.b16 %v1119
          %v1219 = vunpack.c.h.b16 %v1119
          %v1220 = vunpack.c.l.b16 %v1120
          %v1221 = vunpack.c.h.b16 %v1120
          %v1222 = vunpack.c.l.b16 %v1121
          %v1223 = vunpack.c.h.b16 %v1121
          %v1224 = vunpack.c.l.b16 %v1122
          %v1225 = vunpack.c.h.b16 %v1122
          %v1226 = vunpack.c.l.b16 %v1123
          %v1227 = vunpack.c.h.b16 %v1123
          %v1228 = vunpack.c.l.b16 %v1124
          %v1229 = vunpack.c.h.b16 %v1124
          %v1230 = vunpack.c.l.b16 %v1125
          %v1231 = vunpack.c.h.b16 %v1125
          %v1232 = vunpack.c.l.b16 %v1126
          %v1233 = vunpack.c.h.b16 %v1126
          %v1234 = vunpack.c.l.b16 %v1127
          %v1235 = vunpack.c.h.b16 %v1127
          %v1236 = vpack.c.b16 %v1174, %v1172
          %v1237 = vpack.c.b16 %v1175, %v1173
          %v1238 = vpack.c.b16 %v1178, %v1176
          %v1239 = vpack.c.b16 %v1179, %v1177
          %v1240 = vpack.c.b16 %v1182, %v1180
          %v1241 = vpack.c.b16 %v1183, %v1181
          %v1242 = vpack.c.b16 %v1186, %v1184
          %v1243 = vpack.c.b16 %v1187, %v1185
          %v1244 = vpack.c.b16 %v1190, %v1188
          %v1245 = vpack.c.b16 %v1191, %v1189
          %v1246 = vpack.c.b16 %v1194, %v1192
          %v1247 = vpack.c.b16 %v1195, %v1193
          %v1248 = vpack.c.b16 %v1198, %v1196
          %v1249 = vpack.c.b16 %v1199, %v1197
          %v1250 = vpack.c.b16 %v1202, %v1200
          %v1251 = vpack.c.b16 %v1203, %v1201
          %v1252 = vpack.c.b16 %v1206, %v1204
          %v1253 = vpack.c.b16 %v1207, %v1205
          %v1254 = vpack.c.b16 %v1210, %v1208
          %v1255 = vpack.c.b16 %v1211, %v1209
          %v1256 = vpack.c.b16 %v1214, %v1212
          %v1257 = vpack.c.b16 %v1215, %v1213
          %v1258 = vpack.c.b16 %v1218, %v1216
          %v1259 = vpack.c.b16 %v1219, %v1217
          %v1260 = vpack.c.b16 %v1222, %v1220
          %v1261 = vpack.c.b16 %v1223, %v1221
          %v1262 = vpack.c.b16 %v1226, %v1224
          %v1263 = vpack.c.b16 %v1227, %v1225
          %v1264 = vpack.c.b16 %v1230, %v1228
          %v1265 = vpack.c.b16 %v1231, %v1229
          %v1266 = vpack.c.b16 %v1234, %v1232
          %v1267 = vpack.c.b16 %v1235, %v1233
          %1300 = vmatprep.subr.bf16.mxu0 %v1237
          %1301 = vmatpush1.bf16.msra.mxu0 %v1236
          %1302 = vmatprep.subr.bf16.mxu0 %v1239
          %1303 = vmatpush1.bf16.msra.mxu0 %v1238
          %1304 = vmatprep.subr.bf16.mxu0 %v1241
          %1305 = vmatpush1.bf16.msra.mxu0 %v1240
          %1306 = vmatprep.subr.bf16.mxu0 %v1243
          %1307 = vmatpush1.bf16.msra.mxu0 %v1242
          %1308 = vmatprep.subr.bf16.mxu0 %v1245
          %1309 = vmatpush1.bf16.msra.mxu0 %v1244
          %1310 = vmatprep.subr.bf16.mxu0 %v1247
          %1311 = vmatpush1.bf16.msra.mxu0 %v1246
          %1312 = vmatprep.subr.bf16.mxu0 %v1249
          %1313 = vmatpush1.bf16.msra.mxu0 %v1248
          %1314 = vmatprep.subr.bf16.mxu0 %v1251
          %1315 = vmatpush1.bf16.msra.mxu0 %v1250
          %1316 = vmatprep.subr.bf16.mxu0 %v1253
          %1317 = vmatpush1.bf16.msra.mxu0 %v1252
          %1318 = vmatprep.subr.bf16.mxu0 %v1255
          %1319 = vmatpush1.bf16.msra.mxu0 %v1254
          %1320 = vmatprep.subr.bf16.mxu0 %v1257
          %1321 = vmatpush1.bf16.msra.mxu0 %v1256
          %1322 = vmatprep.subr.bf16.mxu0 %v1259
          %1323 = vmatpush1.bf16.msra.mxu0 %v1258
          %1324 = vmatprep.subr.bf16.mxu0 %v1261
          %1325 = vmatpush1.bf16.msra.mxu0 %v1260
          %1326 = vmatprep.subr.bf16.mxu0 %v1263
          %1327 = vmatpush1.bf16.msra.mxu0 %v1262
          %1328 = vmatprep.subr.bf16.mxu0 %v1265
          %1329 = vmatpush1.bf16.msra.mxu0 %v1264
          %1330 = vmatprep.subr.bf16.mxu0 %v1267
          %1331 = vmatpush1.bf16.msra.mxu0 %v1266
          %1332 = vmatprep.mubr.bf16.mxu0 %v1081
          %1333 = vmatmul.mubr.bf16.gmra.mrb[0].mxu0 %v1080
          %v1334 = vpop.f32.mrb[0].mxu0
          %v1335 = vadd.f32 %v1133, %v1334
          %v1336 = vpop.f32.mrb[0].mxu0
          %v1337 = vadd.f32 %v1137, %v1336
          %v1338 = vpop.f32.mrb[0].mxu0
          %v1339 = vadd.f32 %v1133, %v1338
          %v1340 = vpop.f32.mrb[0].mxu0
          %v1341 = vadd.f32 %v1137, %v1340
          %1342 = vmatprep.mubr.bf16.mxu0 %v1083
          %1343 = vmatmul.mubr.bf16.gmra.mrb[0].mxu0 %v1082
          %v1344 = vpop.f32.mrb[0].mxu0
          %v1345 = vadd.f32 %v1133, %v1344
          %v1346 = vpop.f32.mrb[0].mxu0
          %v1347 = vadd.f32 %v1137, %v1346
          %v1348 = vpop.f32.mrb[0].mxu0
          %v1349 = vadd.f32 %v1133, %v1348
          %v1350 = vpop.f32.mrb[0].mxu0
          %v1351 = vadd.f32 %v1137, %v1350
          %1352 = vmatprep.mubr.bf16.mxu0 %v1085
          %1353 = vmatmul.mubr.bf16.gmra.mrb[0].mxu0 %v1084
          %v1354 = vpop.f32.mrb[0].mxu0
          %v1355 = vadd.f32 %v1133, %v1354
          %v1356 = vpop.f32.mrb[0].mxu0
          %v1357 = vadd.f32 %v1137, %v1356
          %v1358 = vpop.f32.mrb[0].mxu0
          %v1359 = vadd.f32 %v1133, %v1358
          %v1360 = vpop.f32.mrb[0].mxu0
          %v1361 = vadd.f32 %v1137, %v1360
          %1362 = vmatprep.mubr.bf16.mxu0 %v1087
          %1363 = vmatmul.mubr.bf16.gmra.mrb[0].mxu0 %v1086
          %v1364 = vpop.f32.mrb[0].mxu0
          %v1365 = vadd.f32 %v1133, %v1364
          %v1366 = vpop.f32.mrb[0].mxu0
          %v1367 = vadd.f32 %v1137, %v1366
          %v1368 = vpop.f32.mrb[0].mxu0
          %v1369 = vadd.f32 %v1133, %v1368
          %v1370 = vpop.f32.mrb[0].mxu0
          %v1371 = vadd.f32 %v1137, %v1370
          %1372 = vmatprep.mubr.bf16.mxu0 %v1089
          %1373 = vmatmul.mubr.bf16.gmra.mrb[0].mxu0 %v1088
          %v1374 = vpop.f32.mrb[0].mxu0
          %v1375 = vadd.f32 %v1133, %v1374
          %v1376 = vpop.f32.mrb[0].mxu0
          %v1377 = vadd.f32 %v1137, %v1376
          %v1378 = vpop.f32.mrb[0].mxu0
          %v1379 = vadd.f32 %v1133, %v1378
          %v1380 = vpop.f32.mrb[0].mxu0
          %v1381 = vadd.f32 %v1137, %v1380
          %1382 = vmatprep.mubr.bf16.mxu0 %v1091
          %1383 = vmatmul.mubr.bf16.gmra.mrb[0].mxu0 %v1090
          %v1384 = vpop.f32.mrb[0].mxu0
          %v1385 = vadd.f32 %v1133, %v1384
          %v1386 = vpop.f32.mrb[0].mxu0
          %v1387 = vadd.f32 %v1137, %v1386
          %v1388 = vpop.f32.mrb[0].mxu0
          %v1389 = vadd.f32 %v1133, %v1388
          %v1390 = vpop.f32.mrb[0].mxu0
          %v1391 = vadd.f32 %v1137, %v1390
          %1392 = vmatprep.mubr.bf16.mxu0 %v1093
          %1393 = vmatmul.mubr.bf16.gmra.mrb[0].mxu0 %v1092
          %v1394 = vpop.f32.mrb[0].mxu0
          %v1395 = vadd.f32 %v1133, %v1394
          %v1396 = vpop.f32.mrb[0].mxu0
          %v1397 = vadd.f32 %v1137, %v1396
          %v1398 = vpop.f32.mrb[0].mxu0
          %v1399 = vadd.f32 %v1133, %v1398
          %v1400 = vpop.f32.mrb[0].mxu0
          %v1401 = vadd.f32 %v1137, %v1400
          %1402 = vmatprep.mubr.bf16.mxu0 %v1095
          %1403 = vmatmul.mubr.bf16.gmra.mrb[0].mxu0 %v1094
          %v1404 = vpop.f32.mrb[0].mxu0
          %v1405 = vadd.f32 %v1133, %v1404
          %v1406 = vpop.f32.mrb[0].mxu0
          %v1407 = vadd.f32 %v1137, %v1406
          %v1408 = vpop.f32.mrb[0].mxu0
          %v1409 = vadd.f32 %v1133, %v1408
          %v1410 = vpop.f32.mrb[0].mxu0
          %v1411 = vadd.f32 %v1137, %v1410
          %1412 = vdwg.mxu0
          %v1413 = vadd.f32 %v1335, %v888
          %v1414 = vadd.f32 %v1337, %v889
          %v1415 = vadd.f32 %v1339, %v890
          %v1416 = vadd.f32 %v1341, %v891
          %v1417 = vadd.f32 %v1345, %v892
          %v1418 = vadd.f32 %v1347, %v893
          %v1419 = vadd.f32 %v1349, %v894
          %v1420 = vadd.f32 %v1351, %v895
          %v1421 = vadd.f32 %v1355, %v896
          %v1422 = vadd.f32 %v1357, %v897
          %v1423 = vadd.f32 %v1359, %v898
          %v1424 = vadd.f32 %v1361, %v899
          %v1425 = vadd.f32 %v1365, %v900
          %v1426 = vadd.f32 %v1367, %v901
          %v1427 = vadd.f32 %v1369, %v902
          %v1428 = vadd.f32 %v1371, %v903
          %v1429 = vadd.f32 %v1375, %v904
          %v1430 = vadd.f32 %v1377, %v905
          %v1431 = vadd.f32 %v1379, %v906
          %v1432 = vadd.f32 %v1381, %v907
          %v1433 = vadd.f32 %v1385, %v908
          %v1434 = vadd.f32 %v1387, %v909
          %v1435 = vadd.f32 %v1389, %v910
          %v1436 = vadd.f32 %v1391, %v911
          %v1437 = vadd.f32 %v1395, %v912
          %v1438 = vadd.f32 %v1397, %v913
          %v1439 = vadd.f32 %v1399, %v914
          %v1440 = vadd.f32 %v1401, %v915
          %v1441 = vadd.f32 %v1405, %v916
          %v1442 = vadd.f32 %v1407, %v917
          %v1443 = vadd.f32 %v1409, %v918
          %v1444 = vadd.f32 %v1411, %v919
          %v1445 = vadd.f32 %v1413, %v1414
          %1446 = vadd.xlane.f32.xlu0 %v1445
          %v1447 = vpop.xlane.xlu0 %1446
          %v1448 = vadd.f32 %v1415, %v1416
          %1449 = vadd.xlane.f32.xlu0 %v1448
          %v1450 = vpop.xlane.xlu0 %1449
          %v1451 = vadd.f32 %v1417, %v1418
          %1452 = vadd.xlane.f32.xlu0 %v1451
          %v1453 = vpop.xlane.xlu0 %1452
          %v1454 = vadd.f32 %v1419, %v1420
          %1455 = vadd.xlane.f32.xlu0 %v1454
          %v1456 = vpop.xlane.xlu0 %1455
          %v1457 = vadd.f32 %v1421, %v1422
          %1458 = vadd.xlane.f32.xlu0 %v1457
          %v1459 = vpop.xlane.xlu0 %1458
          %v1460 = vadd.f32 %v1423, %v1424
          %1461 = vadd.xlane.f32.xlu0 %v1460
          %v1462 = vpop.xlane.xlu0 %1461
          %v1463 = vadd.f32 %v1425, %v1426
          %1464 = vadd.xlane.f32.xlu0 %v1463
          %v1465 = vpop.xlane.xlu0 %1464
          %v1466 = vadd.f32 %v1427, %v1428
          %1467 = vadd.xlane.f32.xlu0 %v1466
          %v1468 = vpop.xlane.xlu0 %1467
          %v1469 = vadd.f32 %v1429, %v1430
          %1470 = vadd.xlane.f32.xlu0 %v1469
          %v1471 = vpop.xlane.xlu0 %1470
          %v1472 = vadd.f32 %v1431, %v1432
          %1473 = vadd.xlane.f32.xlu0 %v1472
          %v1474 = vpop.xlane.xlu0 %1473
          %v1475 = vadd.f32 %v1433, %v1434
          %1476 = vadd.xlane.f32.xlu0 %v1475
          %v1477 = vpop.xlane.xlu0 %1476
          %v1478 = vadd.f32 %v1435, %v1436
          %1479 = vadd.xlane.f32.xlu0 %v1478
          %v1480 = vpop.xlane.xlu0 %1479
          %v1481 = vadd.f32 %v1437, %v1438
          %1482 = vadd.xlane.f32.xlu0 %v1481
          %v1483 = vpop.xlane.xlu0 %1482
          %v1484 = vadd.f32 %v1439, %v1440
          %1485 = vadd.xlane.f32.xlu0 %v1484
          %v1486 = vpop.xlane.xlu0 %1485
          %v1487 = vadd.f32 %v1441, %v1442
          %1488 = vadd.xlane.f32.xlu0 %v1487
          %v1489 = vpop.xlane.xlu0 %1488
          %v1490 = vadd.f32 %v1443, %v1444
          %1491 = vadd.xlane.f32.xlu0 %v1490
          %v1492 = vpop.xlane.xlu0 %1491
          %v1493 = vrcp.pop 256.0
          %v1494 = vmul.f32 %v1447, %v1493
          %v1495 = vmul.f32 %v1450, %v1493
          %v1496 = vmul.f32 %v1453, %v1493
          %v1497 = vmul.f32 %v1456, %v1493
          %v1498 = vmul.f32 %v1459, %v1493
          %v1499 = vmul.f32 %v1462, %v1493
          %v1500 = vmul.f32 %v1465, %v1493
          %v1501 = vmul.f32 %v1468, %v1493
          %v1502 = vmul.f32 %v1471, %v1493
          %v1503 = vmul.f32 %v1474, %v1493
          %v1504 = vmul.f32 %v1477, %v1493
          %v1505 = vmul.f32 %v1480, %v1493
          %v1506 = vmul.f32 %v1483, %v1493
          %v1507 = vmul.f32 %v1486, %v1493
          %v1508 = vmul.f32 %v1489, %v1493
          %v1509 = vmul.f32 %v1492, %v1493
          %v1510 = vsub.f32 %v1413, %v1494
          %v1511 = vsub.f32 %v1414, %v1494
          %v1512 = vsub.f32 %v1415, %v1495
          %v1513 = vsub.f32 %v1416, %v1495
          %v1514 = vsub.f32 %v1417, %v1496
          %v1515 = vsub.f32 %v1418, %v1496
          %v1516 = vsub.f32 %v1419, %v1497
          %v1517 = vsub.f32 %v1420, %v1497
          %v1518 = vsub.f32 %v1421, %v1498
          %v1519 = vsub.f32 %v1422, %v1498
          %v1520 = vsub.f32 %v1423, %v1499
          %v1521 = vsub.f32 %v1424, %v1499
          %v1522 = vsub.f32 %v1425, %v1500
          %v1523 = vsub.f32 %v1426, %v1500
          %v1524 = vsub.f32 %v1427, %v1501
          %v1525 = vsub.f32 %v1428, %v1501
          %v1526 = vsub.f32 %v1429, %v1502
          %v1527 = vsub.f32 %v1430, %v1502
          %v1528 = vsub.f32 %v1431, %v1503
          %v1529 = vsub.f32 %v1432, %v1503
          %v1530 = vsub.f32 %v1433, %v1504
          %v1531 = vsub.f32 %v1434, %v1504
          %v1532 = vsub.f32 %v1435, %v1505
          %v1533 = vsub.f32 %v1436, %v1505
          %v1534 = vsub.f32 %v1437, %v1506
          %v1535 = vsub.f32 %v1438, %v1506
          %v1536 = vsub.f32 %v1439, %v1507
          %v1537 = vsub.f32 %v1440, %v1507
          %v1538 = vsub.f32 %v1441, %v1508
          %v1539 = vsub.f32 %v1442, %v1508
          %v1540 = vsub.f32 %v1443, %v1509
          %v1541 = vsub.f32 %v1444, %v1509
          %v1542 = vmul.f32 %v1510, %v1510
          %v1543 = vmul.f32 %v1511, %v1511
          %v1544 = vmul.f32 %v1512, %v1512
          %v1545 = vmul.f32 %v1513, %v1513
          %v1546 = vmul.f32 %v1514, %v1514
          %v1547 = vmul.f32 %v1515, %v1515
          %v1548 = vmul.f32 %v1516, %v1516
          %v1549 = vmul.f32 %v1517, %v1517
          %v1550 = vmul.f32 %v1518, %v1518
          %v1551 = vmul.f32 %v1519, %v1519
          %v1552 = vmul.f32 %v1520, %v1520
          %v1553 = vmul.f32 %v1521, %v1521
          %v1554 = vmul.f32 %v1522, %v1522
          %v1555 = vmul.f32 %v1523, %v1523
          %v1556 = vmul.f32 %v1524, %v1524
          %v1557 = vmul.f32 %v1525, %v1525
          %v1558 = vmul.f32 %v1526, %v1526
          %v1559 = vmul.f32 %v1527, %v1527
          %v1560 = vmul.f32 %v1528, %v1528
          %v1561 = vmul.f32 %v1529, %v1529
          %v1562 = vmul.f32 %v1530, %v1530
          %v1563 = vmul.f32 %v1531, %v1531
          %v1564 = vmul.f32 %v1532, %v1532
          %v1565 = vmul.f32 %v1533, %v1533
          %v1566 = vmul.f32 %v1534, %v1534
          %v1567 = vmul.f32 %v1535, %v1535
          %v1568 = vmul.f32 %v1536, %v1536
          %v1569 = vmul.f32 %v1537, %v1537
          %v1570 = vmul.f32 %v1538, %v1538
          %v1571 = vmul.f32 %v1539, %v1539
          %v1572 = vmul.f32 %v1540, %v1540
          %v1573 = vmul.f32 %v1541, %v1541
          %v1574 = vadd.f32 %v1542, %v1543
          %1575 = vadd.xlane.f32.xlu0 %v1574
          %v1576 = vpop.xlane.xlu0 %1575
          %v1577 = vadd.f32 %v1544, %v1545
          %1578 = vadd.xlane.f32.xlu0 %v1577
          %v1579 = vpop.xlane.xlu0 %1578
          %v1580 = vadd.f32 %v1546, %v1547
          %1581 = vadd.xlane.f32.xlu0 %v1580
          %v1582 = vpop.xlane.xlu0 %1581
          %v1583 = vadd.f32 %v1548, %v1549
          %1584 = vadd.xlane.f32.xlu0 %v1583
          %v1585 = vpop.xlane.xlu0 %1584
          %v1586 = vadd.f32 %v1550, %v1551
          %1587 = vadd.xlane.f32.xlu0 %v1586
          %v1588 = vpop.xlane.xlu0 %1587
          %v1589 = vadd.f32 %v1552, %v1553
          %1590 = vadd.xlane.f32.xlu0 %v1589
          %v1591 = vpop.xlane.xlu0 %1590
          %v1592 = vadd.f32 %v1554, %v1555
          %1593 = vadd.xlane.f32.xlu0 %v1592
          %v1594 = vpop.xlane.xlu0 %1593
          %v1595 = vadd.f32 %v1556, %v1557
          %1596 = vadd.xlane.f32.xlu0 %v1595
          %v1597 = vpop.xlane.xlu0 %1596
          %v1598 = vadd.f32 %v1558, %v1559
          %1599 = vadd.xlane.f32.xlu0 %v1598
          %v1600 = vpop.xlane.xlu0 %1599
          %v1601 = vadd.f32 %v1560, %v1561
          %1602 = vadd.xlane.f32.xlu0 %v1601
          %v1603 = vpop.xlane.xlu0 %1602
          %v1604 = vadd.f32 %v1562, %v1563
          %1605 = vadd.xlane.f32.xlu0 %v1604
          %v1606 = vpop.xlane.xlu0 %1605
          %v1607 = vadd.f32 %v1564, %v1565
          %1608 = vadd.xlane.f32.xlu0 %v1607
          %v1609 = vpop.xlane.xlu0 %1608
          %v1610 = vadd.f32 %v1566, %v1567
          %1611 = vadd.xlane.f32.xlu0 %v1610
          %v1612 = vpop.xlane.xlu0 %1611
          %v1613 = vadd.f32 %v1568, %v1569
          %1614 = vadd.xlane.f32.xlu0 %v1613
          %v1615 = vpop.xlane.xlu0 %1614
          %v1616 = vadd.f32 %v1570, %v1571
          %1617 = vadd.xlane.f32.xlu0 %v1616
          %v1618 = vpop.xlane.xlu0 %1617
          %v1619 = vadd.f32 %v1572, %v1573
          %1620 = vadd.xlane.f32.xlu0 %v1619
          %v1621 = vpop.xlane.xlu0 %1620
          %v1622 = vmul.f32 %v1576, %v1493
          %v1623 = vmul.f32 %v1579, %v1493
          %v1624 = vmul.f32 %v1582, %v1493
          %v1625 = vmul.f32 %v1585, %v1493
          %v1626 = vmul.f32 %v1588, %v1493
          %v1627 = vmul.f32 %v1591, %v1493
          %v1628 = vmul.f32 %v1594, %v1493
          %v1629 = vmul.f32 %v1597, %v1493
          %v1630 = vmul.f32 %v1600, %v1493
          %v1631 = vmul.f32 %v1603, %v1493
          %v1632 = vmul.f32 %v1606, %v1493
          %v1633 = vmul.f32 %v1609, %v1493
          %v1634 = vmul.f32 %v1612, %v1493
          %v1635 = vmul.f32 %v1615, %v1493
          %v1636 = vmul.f32 %v1618, %v1493
          %v1637 = vmul.f32 %v1621, %v1493
          %v1638 = vadd.f32 %v1622, 1e-05
          %v1639 = vadd.f32 %v1623, 1e-05
          %v1640 = vadd.f32 %v1624, 1e-05
          %v1641 = vadd.f32 %v1625, 1e-05
          %v1642 = vadd.f32 %v1626, 1e-05
          %v1643 = vadd.f32 %v1627, 1e-05
          %v1644 = vadd.f32 %v1628, 1e-05
          %v1645 = vadd.f32 %v1629, 1e-05
          %v1646 = vadd.f32 %v1630, 1e-05
          %v1647 = vadd.f32 %v1631, 1e-05
          %v1648 = vadd.f32 %v1632, 1e-05
          %v1649 = vadd.f32 %v1633, 1e-05
          %v1650 = vadd.f32 %v1634, 1e-05
          %v1651 = vadd.f32 %v1635, 1e-05
          %v1652 = vadd.f32 %v1636, 1e-05
          %v1653 = vadd.f32 %v1637, 1e-05
          %v1654 = vrsqrt.pop %v1638
          %v1655 = vrsqrt.pop %v1639
          %v1656 = vrsqrt.pop %v1640
          %v1657 = vrsqrt.pop %v1641
          %v1658 = vrsqrt.pop %v1642
          %v1659 = vrsqrt.pop %v1643
          %v1660 = vrsqrt.pop %v1644
          %v1661 = vrsqrt.pop %v1645
          %v1662 = vrsqrt.pop %v1646
          %v1663 = vrsqrt.pop %v1647
          %v1664 = vrsqrt.pop %v1648
          %v1665 = vrsqrt.pop %v1649
          %v1666 = vrsqrt.pop %v1650
          %v1667 = vrsqrt.pop %v1651
          %v1668 = vrsqrt.pop %v1652
          %v1669 = vrsqrt.pop %v1653
          %v1670 = vmul.f32 %v1510, %v1654
          %v1671 = vmul.f32 %v1511, %v1654
          %v1672 = vmul.f32 %v1512, %v1655
          %v1673 = vmul.f32 %v1513, %v1655
          %v1674 = vmul.f32 %v1514, %v1656
          %v1675 = vmul.f32 %v1515, %v1656
          %v1676 = vmul.f32 %v1516, %v1657
          %v1677 = vmul.f32 %v1517, %v1657
          %v1678 = vmul.f32 %v1518, %v1658
          %v1679 = vmul.f32 %v1519, %v1658
          %v1680 = vmul.f32 %v1520, %v1659
          %v1681 = vmul.f32 %v1521, %v1659
          %v1682 = vmul.f32 %v1522, %v1660
          %v1683 = vmul.f32 %v1523, %v1660
          %v1684 = vmul.f32 %v1524, %v1661
          %v1685 = vmul.f32 %v1525, %v1661
          %v1686 = vmul.f32 %v1526, %v1662
          %v1687 = vmul.f32 %v1527, %v1662
          %v1688 = vmul.f32 %v1528, %v1663
          %v1689 = vmul.f32 %v1529, %v1663
          %v1690 = vmul.f32 %v1530, %v1664
          %v1691 = vmul.f32 %v1531, %v1664
          %v1692 = vmul.f32 %v1532, %v1665
          %v1693 = vmul.f32 %v1533, %v1665
          %v1694 = vmul.f32 %v1534, %v1666
          %v1695 = vmul.f32 %v1535, %v1666
          %v1696 = vmul.f32 %v1536, %v1667
          %v1697 = vmul.f32 %v1537, %v1667
          %v1698 = vmul.f32 %v1538, %v1668
          %v1699 = vmul.f32 %v1539, %v1668
          %v1700 = vmul.f32 %v1540, %v1669
          %v1701 = vmul.f32 %v1541, %v1669
          %v1702 = vld [vmem:[%s5] sm:$0x3]
          %v1704 = vlaneseq
          %v1705 = vshrl.u32 %v1704, 7
          %v1706 = vsub.s32 0, %v1705
          %v1707 = vrot.slane %v1702, %v1706
          %v1708 = vlaneseq
          %v1709 = vshrl.u32 %v1708, 7
          %v1710 = vsub.s32 1, %v1709
          %v1711 = vrot.slane %v1702, %v1710
          %v1714 = vmul.f32 %v1670, %v1707
          %v1715 = vmul.f32 %v1671, %v1711
          %v1716 = vmul.f32 %v1672, %v1707
          %v1717 = vmul.f32 %v1673, %v1711
          %v1718 = vmul.f32 %v1674, %v1707
          %v1719 = vmul.f32 %v1675, %v1711
          %v1720 = vmul.f32 %v1676, %v1707
          %v1721 = vmul.f32 %v1677, %v1711
          %v1722 = vmul.f32 %v1678, %v1707
          %v1723 = vmul.f32 %v1679, %v1711
          %v1724 = vmul.f32 %v1680, %v1707
          %v1725 = vmul.f32 %v1681, %v1711
          %v1726 = vmul.f32 %v1682, %v1707
          %v1727 = vmul.f32 %v1683, %v1711
          %v1728 = vmul.f32 %v1684, %v1707
          %v1729 = vmul.f32 %v1685, %v1711
          %v1730 = vmul.f32 %v1686, %v1707
          %v1731 = vmul.f32 %v1687, %v1711
          %v1732 = vmul.f32 %v1688, %v1707
          %v1733 = vmul.f32 %v1689, %v1711
          %v1734 = vmul.f32 %v1690, %v1707
          %v1735 = vmul.f32 %v1691, %v1711
          %v1736 = vmul.f32 %v1692, %v1707
          %v1737 = vmul.f32 %v1693, %v1711
          %v1738 = vmul.f32 %v1694, %v1707
          %v1739 = vmul.f32 %v1695, %v1711
          %v1740 = vmul.f32 %v1696, %v1707
          %v1741 = vmul.f32 %v1697, %v1711
          %v1742 = vmul.f32 %v1698, %v1707
          %v1743 = vmul.f32 %v1699, %v1711
          %v1744 = vmul.f32 %v1700, %v1707
          %v1745 = vmul.f32 %v1701, %v1711
          %v1746 = vld [vmem:[%s6] sm:$0x3]
          %v1748 = vlaneseq
          %v1749 = vshrl.u32 %v1748, 7
          %v1750 = vsub.s32 0, %v1749
          %v1751 = vrot.slane %v1746, %v1750
          %v1752 = vlaneseq
          %v1753 = vshrl.u32 %v1752, 7
          %v1754 = vsub.s32 1, %v1753
          %v1755 = vrot.slane %v1746, %v1754
          %v1758 = vadd.f32 %v1714, %v1751
          %v1759 = vadd.f32 %v1715, %v1755
          %v1760 = vadd.f32 %v1716, %v1751
          %v1761 = vadd.f32 %v1717, %v1755
          %v1762 = vadd.f32 %v1718, %v1751
          %v1763 = vadd.f32 %v1719, %v1755
          %v1764 = vadd.f32 %v1720, %v1751
          %v1765 = vadd.f32 %v1721, %v1755
          %v1766 = vadd.f32 %v1722, %v1751
          %v1767 = vadd.f32 %v1723, %v1755
          %v1768 = vadd.f32 %v1724, %v1751
          %v1769 = vadd.f32 %v1725, %v1755
          %v1770 = vadd.f32 %v1726, %v1751
          %v1771 = vadd.f32 %v1727, %v1755
          %v1772 = vadd.f32 %v1728, %v1751
          %v1773 = vadd.f32 %v1729, %v1755
          %v1774 = vadd.f32 %v1730, %v1751
          %v1775 = vadd.f32 %v1731, %v1755
          %v1776 = vadd.f32 %v1732, %v1751
          %v1777 = vadd.f32 %v1733, %v1755
          %v1778 = vadd.f32 %v1734, %v1751
          %v1779 = vadd.f32 %v1735, %v1755
          %v1780 = vadd.f32 %v1736, %v1751
          %v1781 = vadd.f32 %v1737, %v1755
          %v1782 = vadd.f32 %v1738, %v1751
          %v1783 = vadd.f32 %v1739, %v1755
          %v1784 = vadd.f32 %v1740, %v1751
          %v1785 = vadd.f32 %v1741, %v1755
          %v1786 = vadd.f32 %v1742, %v1751
          %v1787 = vadd.f32 %v1743, %v1755
          %v1788 = vadd.f32 %v1744, %v1751
          %v1789 = vadd.f32 %v1745, %v1755
          %1790 = vst [vmem:[%s351] sm:$0xff] %v1758
          %1791 = vst [vmem:[%s351 + $0x8] sm:$0xff] %v1759
          %1792 = vst [vmem:[%s351 + $0x10] sm:$0xff] %v1760
          %1793 = vst [vmem:[%s351 + $0x18] sm:$0xff] %v1761
          %1794 = vst [vmem:[%s351 + $0x20] sm:$0xff] %v1762
          %1795 = vst [vmem:[%s351 + $0x28] sm:$0xff] %v1763
          %1796 = vst [vmem:[%s351 + $0x30] sm:$0xff] %v1764
          %1797 = vst [vmem:[%s351 + $0x38] sm:$0xff] %v1765
          %1798 = vst [vmem:[%s351 + $0x40] sm:$0xff] %v1766
          %1799 = vst [vmem:[%s351 + $0x48] sm:$0xff] %v1767
          %1800 = vst [vmem:[%s351 + $0x50] sm:$0xff] %v1768
          %1801 = vst [vmem:[%s351 + $0x58] sm:$0xff] %v1769
          %1802 = vst [vmem:[%s351 + $0x60] sm:$0xff] %v1770
          %1803 = vst [vmem:[%s351 + $0x68] sm:$0xff] %v1771
          %1804 = vst [vmem:[%s351 + $0x70] sm:$0xff] %v1772
          %1805 = vst [vmem:[%s351 + $0x78] sm:$0xff] %v1773
          %1806 = vst [vmem:[%s351 + $0x80] sm:$0xff] %v1774
          %1807 = vst [vmem:[%s351 + $0x88] sm:$0xff] %v1775
          %1808 = vst [vmem:[%s351 + $0x90] sm:$0xff] %v1776
          %1809 = vst [vmem:[%s351 + $0x98] sm:$0xff] %v1777
          %1810 = vst [vmem:[%s351 + $0xa0] sm:$0xff] %v1778
          %1811 = vst [vmem:[%s351 + $0xa8] sm:$0xff] %v1779
          %1812 = vst [vmem:[%s351 + $0xb0] sm:$0xff] %v1780
          %1813 = vst [vmem:[%s351 + $0xb8] sm:$0xff] %v1781
          %1814 = vst [vmem:[%s351 + $0xc0] sm:$0xff] %v1782
          %1815 = vst [vmem:[%s351 + $0xc8] sm:$0xff] %v1783
          %1816 = vst [vmem:[%s351 + $0xd0] sm:$0xff] %v1784
          %1817 = vst [vmem:[%s351 + $0xd8] sm:$0xff] %v1785
          %1818 = vst [vmem:[%s351 + $0xe0] sm:$0xff] %v1786
          %1819 = vst [vmem:[%s351 + $0xe8] sm:$0xff] %v1787
          %1820 = vst [vmem:[%s351 + $0xf0] sm:$0xff] %v1788
          %1821 = vst [vmem:[%s351 + $0xf8] sm:$0xff] %v1789
        $region68: #{tpu_custom_call.1} parent=47 // pred_fallthru
          _
        %s1822 = sand.u32 %s204, 1
        %s1823 = scalar_lea.sflag [#allocation5], %s1822
        %s1824 = sand.u32 %s204, 1
        %s1825 = smul.addr %s1824, 256
        %s1826 = scalar_lea.vmem [#allocation9], %s1825
        // Predicated region
        $region69: #{tpu_custom_call.1} parent=47 // pred_check
          %p1827 = pneg %p214
        $region70: #{tpu_custom_call.1} parent=47 // pred_check_branch
          %1829 = sbr.rel (%p1827) target = $region72
        $region71: #{tpu_custom_call.1} parent=47 // pred_region
          %s1830 = smul.u32 16, %s29
          %s1832 = ssub.s32 4096, 4096
          %1833 = vsyncadd %s1823, %s1832
          %s1834 = smul.addr %s1830, 2
          %s1835 = smul.addr %s1834, 128
          %s1836 = scalar_lea.hbm %s7, %s1835
          %s1837 = sshll.u32 %s1826, 4
          %s1838 = int_to_ptr.vmem [resolvable:$true] %s1837
          %1843 = dma.vmem_to_hbm [thread:$0]  %s1838, 4096, %s1836, %s1823, 256, 256, 16
        $region72: #{tpu_custom_call.1} parent=47 // pred_fallthru
          _
      $region48: #{tpu_custom_call.1} parent=5 // pred_fallthru
        _
      %p1844 = scmp.le.s32.totalorder 2, %s20
      // Predicated region
      $region73: #{tpu_custom_call.1} parent=5 // pred_check
        %p1845 = pneg %p1844
      $region74: #{tpu_custom_call.1} parent=5 // pred_check_branch
        %1847 = sbr.rel (%p1845) target = $region76
      $region75: #{tpu_custom_call.1} parent=5 // pred_region
        %s1848 = ssub.s32 %s20, 2
        // Predicated region
        $region77: #{tpu_custom_call.1} parent=75 // pred_check
          %p1849 = pneg %p220
        $region78: #{tpu_custom_call.1} parent=75 // pred_check_branch
          %1851 = sbr.rel (%p1849) target = $region80
        $region79: #{tpu_custom_call.1} parent=75 // pred_region
          %s1852 = sand.u32 %s205, 1
          %s1853 = scalar_lea.sflag [#allocation5], %s1852
          %s1854 = sand.u32 %s205, 1
          %s1855 = smul.addr %s1854, 256
          %s1856 = scalar_lea.vmem [#allocation9], %s1855
          %1857 = dma.done %s1853, 4096
        $region80: #{tpu_custom_call.1} parent=75 // pred_fallthru
          _
      $region76: #{tpu_custom_call.1} parent=5 // pred_fallthru
        _
    $region6: #{tpu_custom_call.1} parent=1 // loop_footer
      %s24 = sadd.s32 1, %s20
    $region7: #{tpu_custom_call.1} parent=1 // loop_footer_branch
      %19 = sbr.rel target = $region3
    $region8: #{tpu_custom_call.1} parent=1 // loop_exit
      _
    %1858 = vsyncpa [#allocation4], 1
    %s1859 = scalar_lea.sflag [#allocation4], 1
    %1860 = vsyncpa %s1859, 1
    %1861 = vsyncpa [#allocation7], 1
    %1862 = vsyncpa [#allocation5], 1
    %s1863 = scalar_lea.sflag [#allocation5], 1
    %1864 = vsyncpa %s1863, 1

</llo_original>
